<compile_context>
chip_gen: v7x
topology: tpu7x:2x2x1
jax: 0.10.0
libtpu: 0.0.40
codegen_flags: <defaults>
</compile_context>

<pallas_src>
import jax
import jax.numpy as jnp
from jax import lax
from jax.experimental import pallas as pl
from jax.experimental.pallas import tpu as pltpu
import numpy as np


def bilstm_fused_kernel(x_ref, wih_ref, bias_ref, whh_ref, wemb_ref, bemb_ref,
                        out_ref, gxf_ref, gxb_ref, recf_ref, recb_ref):
    T, b, nIn = x_ref.shape
    H = whh_ref.shape[0] // 2          # whh_ref is the (2H, 8H) block-diagonal matrix
    H4 = 4 * H

    # ---- Prologue: batched input projection for both directions + biases.
    # This is the only matmul that can feed the MXU efficiently, so do all of
    # it in one (T*b, nIn) x (nIn, 8H) push, outside the recurrence.
    x2d = x_ref[...].reshape(T * b, nIn)
    gx = (jnp.dot(x2d, wih_ref[...], preferred_element_type=jnp.float32)
          + bias_ref[...])                                  # (T*b, 8H)
    gxf_ref[...] = gx[:, 0:H4].reshape(T, b, H4)            # forward-direction gates_x
    gxb_ref[...] = gx[:, H4:2 * H4].reshape(T, b, H4)       # backward-direction gates_x

    whh = whh_ref[...]                                      # (2H, 8H), zeros built once outside

    # Lane mask selecting the 'g' (cell) gate block -> tanh, else sigmoid.
    # Hoisted out of the loop (JAX does not CSE broadcast_in_dim).
    lane = lax.broadcasted_iota(jnp.int32, (b, H4), 1)
    g_mask = (lane >= 2 * H) & (lane < 3 * H)

    h_cat = jnp.zeros((b, 2 * H), jnp.float32)              # [h_fwd | h_bwd]
    c_f = jnp.zeros((b, H), jnp.float32)
    c_b = jnp.zeros((b, H), jnp.float32)

    # ---- Time recurrence, fully unrolled (T is static and small here) so the
    # scheduler can interleave adjacent steps' fwd/bwd work.
    # TODO(synk): for long sequences switch to lax.fori_loop(..., unroll=k) to
    # bound live ranges instead of a full Python unroll.
    for s in range(T):
        tb = T - 1 - s
        # one block-diagonal hidden matmul per step (both directions)
        hh = jnp.dot(h_cat, whh, preferred_element_type=jnp.float32)   # (b, 8H)
        gates_f = gxf_ref[s] + hh[:, 0:H4]
        gates_b = gxb_ref[tb] + hh[:, H4:2 * H4]

        # full-width EUP transcendentals + one select instead of per-gate slices
        act_f = jnp.where(g_mask, jnp.tanh(gates_f), jax.nn.sigmoid(gates_f))
        act_b = jnp.where(g_mask, jnp.tanh(gates_b), jax.nn.sigmoid(gates_b))

        # gate layout follows PyTorch: [i | f | g | o]
        c_f = act_f[:, H:2 * H] * c_f + act_f[:, 0:H] * act_f[:, 2 * H:3 * H]
        h_f = act_f[:, 3 * H:4 * H] * jnp.tanh(c_f)
        c_b = act_b[:, H:2 * H] * c_b + act_b[:, 0:H] * act_b[:, 2 * H:3 * H]
        h_b = act_b[:, 3 * H:4 * H] * jnp.tanh(c_b)

        recf_ref[s] = h_f
        recb_ref[tb] = h_b
        h_cat = jnp.concatenate([h_f, h_b], axis=-1)

    # ---- Epilogue: fused concat + embedding Linear over (T*b, 2H).
    # TODO(synk): PyTorch casts the embedding to float64 and back; TPU has no
    # f64 datapath, so this matmul is done in float32.
    rec = jnp.concatenate([recf_ref[...], recb_ref[...]], axis=-1)      # (T, b, 2H)
    rec2d = rec.reshape(T * b, 2 * H)
    out = (jnp.dot(rec2d, wemb_ref[...], preferred_element_type=jnp.float32)
           + bemb_ref[...])                                             # (T*b, nOut_pad)
    out_ref[...] = out.reshape(T, b, out_ref.shape[2])


def _vmem_spec():
    return pl.BlockSpec(memory_space=pltpu.MemorySpace.VMEM)


def bidirectional_lstm_forward(x, params):
    """x: (T, b, nIn) float32  ->  (T, b, nOut) float32."""
    T, b, nIn = x.shape
    H = params["whh_f"].shape[0]
    nOut = params["w_emb"].shape[1]
    H4, H8 = 4 * H, 8 * H
    nOut_pad = ((nOut + 127) // 128) * 128     # lane-dense output slab

    # One-time parameter plumbing (outside the kernel, outside the loop):
    #  - both directions' input weights / biases concatenated -> one big matmul
    #  - block-diagonal recurrent weight -> one MXU push per timestep
    #  - embedding weight/bias lane-padded to a multiple of 128
    wih_big = jnp.concatenate([params["wih_f"], params["wih_b"]], axis=1)     # (nIn, 8H)
    bias_big = jnp.concatenate([params["bias_f"], params["bias_b"]], axis=1)  # (1, 8H)
    whh_bd = jnp.zeros((2 * H, H8), jnp.float32)
    whh_bd = whh_bd.at[:H, :H4].set(params["whh_f"])
    whh_bd = whh_bd.at[H:, H4:].set(params["whh_b"])
    w_emb_p = jnp.pad(params["w_emb"], ((0, 0), (0, nOut_pad - nOut)))
    b_emb_p = jnp.pad(params["b_emb"], ((0, 0), (0, nOut_pad - nOut)))

    out_pad = pl.pallas_call(
        bilstm_fused_kernel,
        out_shape=jax.ShapeDtypeStruct((T, b, nOut_pad), jnp.float32),
        in_specs=[_vmem_spec()] * 6,
        out_specs=_vmem_spec(),
        scratch_shapes=[
            pltpu.VMEM((T, b, H4), jnp.float32),   # precomputed forward gates_x
            pltpu.VMEM((T, b, H4), jnp.float32),   # precomputed backward gates_x
            pltpu.VMEM((T, b, H), jnp.float32),    # forward hidden states
            pltpu.VMEM((T, b, H), jnp.float32),    # backward hidden states
        ],
    )(x, wih_big, bias_big, whh_bd, w_emb_p, b_emb_p)

    return out_pad[:, :, :nOut]


# ----------------------------------------------------------------------------
# Pure-JAX reference (for correctness check only)
# ----------------------------------------------------------------------------
def reference_forward(x, params):
    T, b, nIn = x.shape
    H = params["whh_f"].shape[0]

    def run_dir(xs, wih, whh, bias):
        def cell(carry, x_t):
            h, c = carry
            gates = x_t @ wih + h @ whh + bias
            i = jax.nn.sigmoid(gates[:, 0:H])
            f = jax.nn.sigmoid(gates[:, H:2 * H])
            g = jnp.tanh(gates[:, 2 * H:3 * H])
            o = jax.nn.sigmoid(gates[:, 3 * H:4 * H])
            c = f * c + i * g
            h = o * jnp.tanh(c)
            return (h, c), h
        z = jnp.zeros((b, H), jnp.float32)
        _, hs = lax.scan(cell, (z, z), xs)
        return hs

    hs_f = run_dir(x, params["wih_f"], params["whh_f"], params["bias_f"])
    hs_b = run_dir(x[::-1], params["wih_b"], params["whh_b"], params["bias_b"])[::-1]
    rec = jnp.concatenate([hs_f, hs_b], axis=-1)
    out = rec.reshape(T * b, 2 * H) @ params["w_emb"] + params["b_emb"]
    return out.reshape(T, b, -1)


def init_params(key, nIn, nHidden, nOut):
    ks = jax.random.split(key, 8)
    H = nHidden
    s_lstm = 1.0 / np.sqrt(H)
    s_emb = 1.0 / np.sqrt(2 * H)
    u = lambda k, shape, s: jax.random.uniform(k, shape, jnp.float32, -s, s)
    return {
        # weights pre-transposed to (in, 4H) for right-multiplication;
        # gate order [i | f | g | o] as in PyTorch
        "wih_f": u(ks[0], (nIn, 4 * H), s_lstm),
        "whh_f": u(ks[1], (H, 4 * H), s_lstm),
        "bias_f": u(ks[2], (1, 4 * H), s_lstm),   # = bias_ih + bias_hh combined
        "wih_b": u(ks[3], (nIn, 4 * H), s_lstm),
        "whh_b": u(ks[4], (H, 4 * H), s_lstm),
        "bias_b": u(ks[5], (1, 4 * H), s_lstm),
        "w_emb": u(ks[6], (2 * H, nOut), s_emb),
        "b_emb": u(ks[7], (1, nOut), s_emb),
    }


if __name__ == "__main__":
    T, b, nIn, nHidden, nOut = 8, 2, 32, 32, 16
    key = jax.random.PRNGKey(0)
    kx, kp = jax.random.split(key)
    x = jax.random.normal(kx, (T, b, nIn), jnp.float32)
    params = init_params(kp, nIn, nHidden, nOut)

    out = jax.block_until_ready(bidirectional_lstm_forward(x, params))
    ref = jax.block_until_ready(reference_forward(x, params))

    assert out.shape == (T, b, nOut), out.shape
    np.testing.assert_allclose(np.asarray(out), np.asarray(ref),
                               rtol=1e-4, atol=1e-4)
    print("KERNEL_OK")
</pallas_src>

<mosaic_0001>
module attributes {stable_mosaic.version = 11 : i64} {
  func.func @bilstm_fused_kernel(%arg0: memref<8x2x32xf32, #tpu.memory_space<vmem>>, %arg1: memref<32x256xf32, #tpu.memory_space<vmem>>, %arg2: memref<1x256xf32, #tpu.memory_space<vmem>>, %arg3: memref<64x256xf32, #tpu.memory_space<vmem>>, %arg4: memref<64x128xf32, #tpu.memory_space<vmem>>, %arg5: memref<1x128xf32, #tpu.memory_space<vmem>>, %arg6: memref<8x2x128xf32, #tpu.memory_space<vmem>>, %arg7: memref<8x2x128xf32, #tpu.memory_space<vmem>>, %arg8: memref<8x2x128xf32, #tpu.memory_space<vmem>>, %arg9: memref<8x2x32xf32, #tpu.memory_space<vmem>>, %arg10: memref<8x2x32xf32, #tpu.memory_space<vmem>>) attributes {dimension_semantics = [], scalar_prefetch = 0 : i64, scratch_operands = 4 : i64, tpu.core_type = #tpu.core_type<tc>} {
    %c0 = arith.constant 0 : index
    %c0_0 = arith.constant 0 : index
    %c0_1 = arith.constant 0 : index
    %0 = vector.load %arg0[%c0, %c0_0, %c0_1] : memref<8x2x32xf32, #tpu.memory_space<vmem>>, vector<8x2x32xf32>
    %1 = vector.shape_cast %0 : vector<8x2x32xf32> to vector<16x32xf32>
    %c0_2 = arith.constant 0 : index
    %c0_3 = arith.constant 0 : index
    %2 = vector.load %arg1[%c0_2, %c0_3] : memref<32x256xf32, #tpu.memory_space<vmem>>, vector<32x256xf32>
    %cst = arith.constant dense<0.000000e+00> : vector<16x256xf32>
    %3 = tpu.matmul %1, %2, %cst {dimension_numbers = #tpu.dot_dimension_numbers<[1], [0], [0], [1], [0, 0, 1, 1], [], []>} : vector<16x32xf32>, vector<32x256xf32>, vector<16x256xf32> -> vector<16x256xf32>
    %c0_4 = arith.constant 0 : index
    %c0_5 = arith.constant 0 : index
    %4 = vector.load %arg2[%c0_4, %c0_5] : memref<1x256xf32, #tpu.memory_space<vmem>>, vector<1x256xf32>
    %5 = vector.broadcast %4 : vector<1x256xf32> to vector<16x256xf32>
    %6 = arith.addf %3, %5 : vector<16x256xf32>
    %7 = vector.extract_strided_slice %6 {offsets = [0, 0], sizes = [16, 128], strides = [1, 1]} : vector<16x256xf32> to vector<16x128xf32>
    %8 = vector.shape_cast %7 : vector<16x128xf32> to vector<8x2x128xf32>
    %c0_6 = arith.constant 0 : index
    %c0_7 = arith.constant 0 : index
    %c0_8 = arith.constant 0 : index
    %9 = vector.load %arg7[%c0_6, %c0_7, %c0_8] : memref<8x2x128xf32, #tpu.memory_space<vmem>>, vector<8x2x128xf32>
    tpu.vector_store %arg7[%c0_6, %c0_7, %c0_8], %8 {strides = array<i32>} : memref<8x2x128xf32, #tpu.memory_space<vmem>>, vector<8x2x128xf32>,
    %10 = vector.extract_strided_slice %6 {offsets = [0, 128], sizes = [16, 128], strides = [1, 1]} : vector<16x256xf32> to vector<16x128xf32>
    %11 = vector.shape_cast %10 : vector<16x128xf32> to vector<8x2x128xf32>
    %c0_9 = arith.constant 0 : index
    %c0_10 = arith.constant 0 : index
    %c0_11 = arith.constant 0 : index
    %12 = vector.load %arg8[%c0_9, %c0_10, %c0_11] : memref<8x2x128xf32, #tpu.memory_space<vmem>>, vector<8x2x128xf32>
    tpu.vector_store %arg8[%c0_9, %c0_10, %c0_11], %11 {strides = array<i32>} : memref<8x2x128xf32, #tpu.memory_space<vmem>>, vector<8x2x128xf32>,
    %c0_12 = arith.constant 0 : index
    %c0_13 = arith.constant 0 : index
    %13 = vector.load %arg3[%c0_12, %c0_13] : memref<64x256xf32, #tpu.memory_space<vmem>>, vector<64x256xf32>
    %14 = tpu.iota {dimensions = array<i32: 1>} : vector<2x128xi32>
    %c64_i32 = arith.constant 64 : i32
    %15 = vector.broadcast %c64_i32 : i32 to vector<2x128xi32>
    %16 = arith.cmpi sge, %14, %15 : vector<2x128xi32>
    %c96_i32 = arith.constant 96 : i32
    %17 = vector.broadcast %c96_i32 : i32 to vector<2x128xi32>
    %18 = arith.cmpi slt, %14, %17 : vector<2x128xi32>
    %19 = arith.andi %16, %18 : vector<2x128xi1>
    %cst_14 = arith.constant 0.000000e+00 : f32
    %20 = vector.broadcast %cst_14 : f32 to vector<2x64xf32>
    %cst_15 = arith.constant 0.000000e+00 : f32
    %21 = vector.broadcast %cst_15 : f32 to vector<2x32xf32>
    %cst_16 = arith.constant 0.000000e+00 : f32
    %22 = vector.broadcast %cst_16 : f32 to vector<2x32xf32>
    %cst_17 = arith.constant dense<0.000000e+00> : vector<2x256xf32>
    %23 = tpu.matmul %20, %13, %cst_17 {dimension_numbers = #tpu.dot_dimension_numbers<[1], [0], [0], [1], [0, 0, 1, 1], [], []>} : vector<2x64xf32>, vector<64x256xf32>, vector<2x256xf32> -> vector<2x256xf32>
    %c0_18 = arith.constant 0 : index
    %c0_19 = arith.constant 0 : index
    %c0_20 = arith.constant 0 : index
    %24 = vector.load %arg7[%c0_18, %c0_19, %c0_20] : memref<8x2x128xf32, #tpu.memory_space<vmem>>, vector<1x2x128xf32>
    %25 = vector.shape_cast %24 : vector<1x2x128xf32> to vector<2x128xf32>
    %26 = vector.extract_strided_slice %23 {offsets = [0, 0], sizes = [2, 128], strides = [1, 1]} : vector<2x256xf32> to vector<2x128xf32>
    %27 = arith.addf %25, %26 : vector<2x128xf32>
    %c7 = arith.constant 7 : index
    %c0_21 = arith.constant 0 : index
    %c0_22 = arith.constant 0 : index
    %28 = vector.load %arg8[%c7, %c0_21, %c0_22] : memref<8x2x128xf32, #tpu.memory_space<vmem>>, vector<1x2x128xf32>
    %29 = vector.shape_cast %28 : vector<1x2x128xf32> to vector<2x128xf32>
    %30 = vector.extract_strided_slice %23 {offsets = [0, 128], sizes = [2, 128], strides = [1, 1]} : vector<2x256xf32> to vector<2x128xf32>
    %31 = arith.addf %29, %30 : vector<2x128xf32>
    %32 = math.tanh %27 : vector<2x128xf32>
    %33 = arith.negf %27 : vector<2x128xf32>
    %34 = math.exp %33 : vector<2x128xf32>
    %cst_23 = arith.constant 1.000000e+00 : f32
    %35 = vector.broadcast %cst_23 : f32 to vector<2x128xf32>
    %36 = arith.addf %35, %34 : vector<2x128xf32>
    %37 = arith.divf %35, %36 : vector<2x128xf32>
    %38 = arith.select %19, %32, %37 : vector<2x128xi1>, vector<2x128xf32>
    %39 = math.tanh %31 : vector<2x128xf32>
    %40 = arith.negf %31 : vector<2x128xf32>
    %41 = math.exp %40 : vector<2x128xf32>
    %cst_24 = arith.constant 1.000000e+00 : f32
    %42 = vector.broadcast %cst_24 : f32 to vector<2x128xf32>
    %43 = arith.addf %42, %41 : vector<2x128xf32>
    %44 = arith.divf %42, %43 : vector<2x128xf32>
    %45 = arith.select %19, %39, %44 : vector<2x128xi1>, vector<2x128xf32>
    %46 = vector.extract_strided_slice %38 {offsets = [0, 32], sizes = [2, 32], strides = [1, 1]} : vector<2x128xf32> to vector<2x32xf32>
    %47 = arith.mulf %46, %21 : vector<2x32xf32>
    %48 = vector.extract_strided_slice %38 {offsets = [0, 0], sizes = [2, 32], strides = [1, 1]} : vector<2x128xf32> to vector<2x32xf32>
    %49 = vector.extract_strided_slice %38 {offsets = [0, 64], sizes = [2, 32], strides = [1, 1]} : vector<2x128xf32> to vector<2x32xf32>
    %50 = arith.mulf %48, %49 : vector<2x32xf32>
    %51 = arith.addf %47, %50 : vector<2x32xf32>
    %52 = vector.extract_strided_slice %38 {offsets = [0, 96], sizes = [2, 32], strides = [1, 1]} : vector<2x128xf32> to vector<2x32xf32>
    %53 = math.tanh %51 : vector<2x32xf32>
    %54 = arith.mulf %52, %53 : vector<2x32xf32>
    %55 = vector.extract_strided_slice %45 {offsets = [0, 32], sizes = [2, 32], strides = [1, 1]} : vector<2x128xf32> to vector<2x32xf32>
    %56 = arith.mulf %55, %22 : vector<2x32xf32>
    %57 = vector.extract_strided_slice %45 {offsets = [0, 0], sizes = [2, 32], strides = [1, 1]} : vector<2x128xf32> to vector<2x32xf32>
    %58 = vector.extract_strided_slice %45 {offsets = [0, 64], sizes = [2, 32], strides = [1, 1]} : vector<2x128xf32> to vector<2x32xf32>
    %59 = arith.mulf %57, %58 : vector<2x32xf32>
    %60 = arith.addf %56, %59 : vector<2x32xf32>
    %61 = vector.extract_strided_slice %45 {offsets = [0, 96], sizes = [2, 32], strides = [1, 1]} : vector<2x128xf32> to vector<2x32xf32>
    %62 = math.tanh %60 : vector<2x32xf32>
    %63 = arith.mulf %61, %62 : vector<2x32xf32>
    %c0_25 = arith.constant 0 : index
    %c0_26 = arith.constant 0 : index
    %c0_27 = arith.constant 0 : index
    %64 = vector.load %arg9[%c0_25, %c0_26, %c0_27] : memref<8x2x32xf32, #tpu.memory_space<vmem>>, vector<1x2x32xf32>
    %65 = vector.shape_cast %64 : vector<1x2x32xf32> to vector<2x32xf32>
    %66 = vector.shape_cast %54 : vector<2x32xf32> to vector<1x2x32xf32>
    tpu.vector_store %arg9[%c0_25, %c0_26, %c0_27], %66 {strides = array<i32>} : memref<8x2x32xf32, #tpu.memory_space<vmem>>, vector<1x2x32xf32>,
    %c7_28 = arith.constant 7 : index
    %c0_29 = arith.constant 0 : index
    %c0_30 = arith.constant 0 : index
    %67 = vector.load %arg10[%c7_28, %c0_29, %c0_30] : memref<8x2x32xf32, #tpu.memory_space<vmem>>, vector<1x2x32xf32>
    %68 = vector.shape_cast %67 : vector<1x2x32xf32> to vector<2x32xf32>
    %69 = vector.shape_cast %63 : vector<2x32xf32> to vector<1x2x32xf32>
    tpu.vector_store %arg10[%c7_28, %c0_29, %c0_30], %69 {strides = array<i32>} : memref<8x2x32xf32, #tpu.memory_space<vmem>>, vector<1x2x32xf32>,
    %70 = tpu.concatenate %54, %63 in 1 : vector<2x32xf32>, vector<2x32xf32> -> vector<2x64xf32>
    %cst_31 = arith.constant dense<0.000000e+00> : vector<2x256xf32>
    %71 = tpu.matmul %70, %13, %cst_31 {dimension_numbers = #tpu.dot_dimension_numbers<[1], [0], [0], [1], [0, 0, 1, 1], [], []>} : vector<2x64xf32>, vector<64x256xf32>, vector<2x256xf32> -> vector<2x256xf32>
    %c1 = arith.constant 1 : index
    %c0_32 = arith.constant 0 : index
    %c0_33 = arith.constant 0 : index
    %72 = vector.load %arg7[%c1, %c0_32, %c0_33] : memref<8x2x128xf32, #tpu.memory_space<vmem>>, vector<1x2x128xf32>
    %73 = vector.shape_cast %72 : vector<1x2x128xf32> to vector<2x128xf32>
    %74 = vector.extract_strided_slice %71 {offsets = [0, 0], sizes = [2, 128], strides = [1, 1]} : vector<2x256xf32> to vector<2x128xf32>
    %75 = arith.addf %73, %74 : vector<2x128xf32>
    %c6 = arith.constant 6 : index
    %c0_34 = arith.constant 0 : index
    %c0_35 = arith.constant 0 : index
    %76 = vector.load %arg8[%c6, %c0_34, %c0_35] : memref<8x2x128xf32, #tpu.memory_space<vmem>>, vector<1x2x128xf32>
    %77 = vector.shape_cast %76 : vector<1x2x128xf32> to vector<2x128xf32>
    %78 = vector.extract_strided_slice %71 {offsets = [0, 128], sizes = [2, 128], strides = [1, 1]} : vector<2x256xf32> to vector<2x128xf32>
    %79 = arith.addf %77, %78 : vector<2x128xf32>
    %80 = math.tanh %75 : vector<2x128xf32>
    %81 = arith.negf %75 : vector<2x128xf32>
    %82 = math.exp %81 : vector<2x128xf32>
    %cst_36 = arith.constant 1.000000e+00 : f32
    %83 = vector.broadcast %cst_36 : f32 to vector<2x128xf32>
    %84 = arith.addf %83, %82 : vector<2x128xf32>
    %85 = arith.divf %83, %84 : vector<2x128xf32>
    %86 = arith.select %19, %80, %85 : vector<2x128xi1>, vector<2x128xf32>
    %87 = math.tanh %79 : vector<2x128xf32>
    %88 = arith.negf %79 : vector<2x128xf32>
    %89 = math.exp %88 : vector<2x128xf32>
    %cst_37 = arith.constant 1.000000e+00 : f32
    %90 = vector.broadcast %cst_37 : f32 to vector<2x128xf32>
    %91 = arith.addf %90, %89 : vector<2x128xf32>
    %92 = arith.divf %90, %91 : vector<2x128xf32>
    %93 = arith.select %19, %87, %92 : vector<2x128xi1>, vector<2x128xf32>
    %94 = vector.extract_strided_slice %86 {offsets = [0, 32], sizes = [2, 32], strides = [1, 1]} : vector<2x128xf32> to vector<2x32xf32>
    %95 = arith.mulf %94, %51 : vector<2x32xf32>
    %96 = vector.extract_strided_slice %86 {offsets = [0, 0], sizes = [2, 32], strides = [1, 1]} : vector<2x128xf32> to vector<2x32xf32>
    %97 = vector.extract_strided_slice %86 {offsets = [0, 64], sizes = [2, 32], strides = [1, 1]} : vector<2x128xf32> to vector<2x32xf32>
    %98 = arith.mulf %96, %97 : vector<2x32xf32>
    %99 = arith.addf %95, %98 : vector<2x32xf32>
    %100 = vector.extract_strided_slice %86 {offsets = [0, 96], sizes = [2, 32], strides = [1, 1]} : vector<2x128xf32> to vector<2x32xf32>
    %101 = math.tanh %99 : vector<2x32xf32>
    %102 = arith.mulf %100, %101 : vector<2x32xf32>
    %103 = vector.extract_strided_slice %93 {offsets = [0, 32], sizes = [2, 32], strides = [1, 1]} : vector<2x128xf32> to vector<2x32xf32>
    %104 = arith.mulf %103, %60 : vector<2x32xf32>
    %105 = vector.extract_strided_slice %93 {offsets = [0, 0], sizes = [2, 32], strides = [1, 1]} : vector<2x128xf32> to vector<2x32xf32>
    %106 = vector.extract_strided_slice %93 {offsets = [0, 64], sizes = [2, 32], strides = [1, 1]} : vector<2x128xf32> to vector<2x32xf32>
    %107 = arith.mulf %105, %106 : vector<2x32xf32>
    %108 = arith.addf %104, %107 : vector<2x32xf32>
    %109 = vector.extract_strided_slice %93 {offsets = [0, 96], sizes = [2, 32], strides = [1, 1]} : vector<2x128xf32> to vector<2x32xf32>
    %110 = math.tanh %108 : vector<2x32xf32>
    %111 = arith.mulf %109, %110 : vector<2x32xf32>
    %c1_38 = arith.constant 1 : index
    %c0_39 = arith.constant 0 : index
    %c0_40 = arith.constant 0 : index
    %112 = vector.load %arg9[%c1_38, %c0_39, %c0_40] : memref<8x2x32xf32, #tpu.memory_space<vmem>>, vector<1x2x32xf32>
    %113 = vector.shape_cast %112 : vector<1x2x32xf32> to vector<2x32xf32>
    %114 = vector.shape_cast %102 : vector<2x32xf32> to vector<1x2x32xf32>
    tpu.vector_store %arg9[%c1_38, %c0_39, %c0_40], %114 {strides = array<i32>} : memref<8x2x32xf32, #tpu.memory_space<vmem>>, vector<1x2x32xf32>,
    %c6_41 = arith.constant 6 : index
    %c0_42 = arith.constant 0 : index
    %c0_43 = arith.constant 0 : index
    %115 = vector.load %arg10[%c6_41, %c0_42, %c0_43] : memref<8x2x32xf32, #tpu.memory_space<vmem>>, vector<1x2x32xf32>
    %116 = vector.shape_cast %115 : vector<1x2x32xf32> to vector<2x32xf32>
    %117 = vector.shape_cast %111 : vector<2x32xf32> to vector<1x2x32xf32>
    tpu.vector_store %arg10[%c6_41, %c0_42, %c0_43], %117 {strides = array<i32>} : memref<8x2x32xf32, #tpu.memory_space<vmem>>, vector<1x2x32xf32>,
    %118 = tpu.concatenate %102, %111 in 1 : vector<2x32xf32>, vector<2x32xf32> -> vector<2x64xf32>
    %cst_44 = arith.constant dense<0.000000e+00> : vector<2x256xf32>
    %119 = tpu.matmul %118, %13, %cst_44 {dimension_numbers = #tpu.dot_dimension_numbers<[1], [0], [0], [1], [0, 0, 1, 1], [], []>} : vector<2x64xf32>, vector<64x256xf32>, vector<2x256xf32> -> vector<2x256xf32>
    %c2 = arith.constant 2 : index
    %c0_45 = arith.constant 0 : index
    %c0_46 = arith.constant 0 : index
    %120 = vector.load %arg7[%c2, %c0_45, %c0_46] : memref<8x2x128xf32, #tpu.memory_space<vmem>>, vector<1x2x128xf32>
    %121 = vector.shape_cast %120 : vector<1x2x128xf32> to vector<2x128xf32>
    %122 = vector.extract_strided_slice %119 {offsets = [0, 0], sizes = [2, 128], strides = [1, 1]} : vector<2x256xf32> to vector<2x128xf32>
    %123 = arith.addf %121, %122 : vector<2x128xf32>
    %c5 = arith.constant 5 : index
    %c0_47 = arith.constant 0 : index
    %c0_48 = arith.constant 0 : index
    %124 = vector.load %arg8[%c5, %c0_47, %c0_48] : memref<8x2x128xf32, #tpu.memory_space<vmem>>, vector<1x2x128xf32>
    %125 = vector.shape_cast %124 : vector<1x2x128xf32> to vector<2x128xf32>
    %126 = vector.extract_strided_slice %119 {offsets = [0, 128], sizes = [2, 128], strides = [1, 1]} : vector<2x256xf32> to vector<2x128xf32>
    %127 = arith.addf %125, %126 : vector<2x128xf32>
    %128 = math.tanh %123 : vector<2x128xf32>
    %129 = arith.negf %123 : vector<2x128xf32>
    %130 = math.exp %129 : vector<2x128xf32>
    %cst_49 = arith.constant 1.000000e+00 : f32
    %131 = vector.broadcast %cst_49 : f32 to vector<2x128xf32>
    %132 = arith.addf %131, %130 : vector<2x128xf32>
    %133 = arith.divf %131, %132 : vector<2x128xf32>
    %134 = arith.select %19, %128, %133 : vector<2x128xi1>, vector<2x128xf32>
    %135 = math.tanh %127 : vector<2x128xf32>
    %136 = arith.negf %127 : vector<2x128xf32>
    %137 = math.exp %136 : vector<2x128xf32>
    %cst_50 = arith.constant 1.000000e+00 : f32
    %138 = vector.broadcast %cst_50 : f32 to vector<2x128xf32>
    %139 = arith.addf %138, %137 : vector<2x128xf32>
    %140 = arith.divf %138, %139 : vector<2x128xf32>
    %141 = arith.select %19, %135, %140 : vector<2x128xi1>, vector<2x128xf32>
    %142 = vector.extract_strided_slice %134 {offsets = [0, 32], sizes = [2, 32], strides = [1, 1]} : vector<2x128xf32> to vector<2x32xf32>
    %143 = arith.mulf %142, %99 : vector<2x32xf32>
    %144 = vector.extract_strided_slice %134 {offsets = [0, 0], sizes = [2, 32], strides = [1, 1]} : vector<2x128xf32> to vector<2x32xf32>
    %145 = vector.extract_strided_slice %134 {offsets = [0, 64], sizes = [2, 32], strides = [1, 1]} : vector<2x128xf32> to vector<2x32xf32>
    %146 = arith.mulf %144, %145 : vector<2x32xf32>
    %147 = arith.addf %143, %146 : vector<2x32xf32>
    %148 = vector.extract_strided_slice %134 {offsets = [0, 96], sizes = [2, 32], strides = [1, 1]} : vector<2x128xf32> to vector<2x32xf32>
    %149 = math.tanh %147 : vector<2x32xf32>
    %150 = arith.mulf %148, %149 : vector<2x32xf32>
    %151 = vector.extract_strided_slice %141 {offsets = [0, 32], sizes = [2, 32], strides = [1, 1]} : vector<2x128xf32> to vector<2x32xf32>
    %152 = arith.mulf %151, %108 : vector<2x32xf32>
    %153 = vector.extract_strided_slice %141 {offsets = [0, 0], sizes = [2, 32], strides = [1, 1]} : vector<2x128xf32> to vector<2x32xf32>
    %154 = vector.extract_strided_slice %141 {offsets = [0, 64], sizes = [2, 32], strides = [1, 1]} : vector<2x128xf32> to vector<2x32xf32>
    %155 = arith.mulf %153, %154 : vector<2x32xf32>
    %156 = arith.addf %152, %155 : vector<2x32xf32>
    %157 = vector.extract_strided_slice %141 {offsets = [0, 96], sizes = [2, 32], strides = [1, 1]} : vector<2x128xf32> to vector<2x32xf32>
    %158 = math.tanh %156 : vector<2x32xf32>
    %159 = arith.mulf %157, %158 : vector<2x32xf32>
    %c2_51 = arith.constant 2 : index
    %c0_52 = arith.constant 0 : index
    %c0_53 = arith.constant 0 : index
    %160 = vector.load %arg9[%c2_51, %c0_52, %c0_53] : memref<8x2x32xf32, #tpu.memory_space<vmem>>, vector<1x2x32xf32>
    %161 = vector.shape_cast %160 : vector<1x2x32xf32> to vector<2x32xf32>
    %162 = vector.shape_cast %150 : vector<2x32xf32> to vector<1x2x32xf32>
    tpu.vector_store %arg9[%c2_51, %c0_52, %c0_53], %162 {strides = array<i32>} : memref<8x2x32xf32, #tpu.memory_space<vmem>>, vector<1x2x32xf32>,
    %c5_54 = arith.constant 5 : index
    %c0_55 = arith.constant 0 : index
    %c0_56 = arith.constant 0 : index
    %163 = vector.load %arg10[%c5_54, %c0_55, %c0_56] : memref<8x2x32xf32, #tpu.memory_space<vmem>>, vector<1x2x32xf32>
    %164 = vector.shape_cast %163 : vector<1x2x32xf32> to vector<2x32xf32>
    %165 = vector.shape_cast %159 : vector<2x32xf32> to vector<1x2x32xf32>
    tpu.vector_store %arg10[%c5_54, %c0_55, %c0_56], %165 {strides = array<i32>} : memref<8x2x32xf32, #tpu.memory_space<vmem>>, vector<1x2x32xf32>,
    %166 = tpu.concatenate %150, %159 in 1 : vector<2x32xf32>, vector<2x32xf32> -> vector<2x64xf32>
    %cst_57 = arith.constant dense<0.000000e+00> : vector<2x256xf32>
    %167 = tpu.matmul %166, %13, %cst_57 {dimension_numbers = #tpu.dot_dimension_numbers<[1], [0], [0], [1], [0, 0, 1, 1], [], []>} : vector<2x64xf32>, vector<64x256xf32>, vector<2x256xf32> -> vector<2x256xf32>
    %c3 = arith.constant 3 : index
    %c0_58 = arith.constant 0 : index
    %c0_59 = arith.constant 0 : index
    %168 = vector.load %arg7[%c3, %c0_58, %c0_59] : memref<8x2x128xf32, #tpu.memory_space<vmem>>, vector<1x2x128xf32>
    %169 = vector.shape_cast %168 : vector<1x2x128xf32> to vector<2x128xf32>
    %170 = vector.extract_strided_slice %167 {offsets = [0, 0], sizes = [2, 128], strides = [1, 1]} : vector<2x256xf32> to vector<2x128xf32>
    %171 = arith.addf %169, %170 : vector<2x128xf32>
    %c4 = arith.constant 4 : index
    %c0_60 = arith.constant 0 : index
    %c0_61 = arith.constant 0 : index
    %172 = vector.load %arg8[%c4, %c0_60, %c0_61] : memref<8x2x128xf32, #tpu.memory_space<vmem>>, vector<1x2x128xf32>
    %173 = vector.shape_cast %172 : vector<1x2x128xf32> to vector<2x128xf32>
    %174 = vector.extract_strided_slice %167 {offsets = [0, 128], sizes = [2, 128], strides = [1, 1]} : vector<2x256xf32> to vector<2x128xf32>
    %175 = arith.addf %173, %174 : vector<2x128xf32>
    %176 = math.tanh %171 : vector<2x128xf32>
    %177 = arith.negf %171 : vector<2x128xf32>
    %178 = math.exp %177 : vector<2x128xf32>
    %cst_62 = arith.constant 1.000000e+00 : f32
    %179 = vector.broadcast %cst_62 : f32 to vector<2x128xf32>
    %180 = arith.addf %179, %178 : vector<2x128xf32>
    %181 = arith.divf %179, %180 : vector<2x128xf32>
    %182 = arith.select %19, %176, %181 : vector<2x128xi1>, vector<2x128xf32>
    %183 = math.tanh %175 : vector<2x128xf32>
    %184 = arith.negf %175 : vector<2x128xf32>
    %185 = math.exp %184 : vector<2x128xf32>
    %cst_63 = arith.constant 1.000000e+00 : f32
    %186 = vector.broadcast %cst_63 : f32 to vector<2x128xf32>
    %187 = arith.addf %186, %185 : vector<2x128xf32>
    %188 = arith.divf %186, %187 : vector<2x128xf32>
    %189 = arith.select %19, %183, %188 : vector<2x128xi1>, vector<2x128xf32>
    %190 = vector.extract_strided_slice %182 {offsets = [0, 32], sizes = [2, 32], strides = [1, 1]} : vector<2x128xf32> to vector<2x32xf32>
    %191 = arith.mulf %190, %147 : vector<2x32xf32>
    %192 = vector.extract_strided_slice %182 {offsets = [0, 0], sizes = [2, 32], strides = [1, 1]} : vector<2x128xf32> to vector<2x32xf32>
    %193 = vector.extract_strided_slice %182 {offsets = [0, 64], sizes = [2, 32], strides = [1, 1]} : vector<2x128xf32> to vector<2x32xf32>
    %194 = arith.mulf %192, %193 : vector<2x32xf32>
    %195 = arith.addf %191, %194 : vector<2x32xf32>
    %196 = vector.extract_strided_slice %182 {offsets = [0, 96], sizes = [2, 32], strides = [1, 1]} : vector<2x128xf32> to vector<2x32xf32>
    %197 = math.tanh %195 : vector<2x32xf32>
    %198 = arith.mulf %196, %197 : vector<2x32xf32>
    %199 = vector.extract_strided_slice %189 {offsets = [0, 32], sizes = [2, 32], strides = [1, 1]} : vector<2x128xf32> to vector<2x32xf32>
    %200 = arith.mulf %199, %156 : vector<2x32xf32>
    %201 = vector.extract_strided_slice %189 {offsets = [0, 0], sizes = [2, 32], strides = [1, 1]} : vector<2x128xf32> to vector<2x32xf32>
    %202 = vector.extract_strided_slice %189 {offsets = [0, 64], sizes = [2, 32], strides = [1, 1]} : vector<2x128xf32> to vector<2x32xf32>
    %203 = arith.mulf %201, %202 : vector<2x32xf32>
    %204 = arith.addf %200, %203 : vector<2x32xf32>
    %205 = vector.extract_strided_slice %189 {offsets = [0, 96], sizes = [2, 32], strides = [1, 1]} : vector<2x128xf32> to vector<2x32xf32>
    %206 = math.tanh %204 : vector<2x32xf32>
    %207 = arith.mulf %205, %206 : vector<2x32xf32>
    %c3_64 = arith.constant 3 : index
    %c0_65 = arith.constant 0 : index
    %c0_66 = arith.constant 0 : index
    %208 = vector.load %arg9[%c3_64, %c0_65, %c0_66] : memref<8x2x32xf32, #tpu.memory_space<vmem>>, vector<1x2x32xf32>
    %209 = vector.shape_cast %208 : vector<1x2x32xf32> to vector<2x32xf32>
    %210 = vector.shape_cast %198 : vector<2x32xf32> to vector<1x2x32xf32>
    tpu.vector_store %arg9[%c3_64, %c0_65, %c0_66], %210 {strides = array<i32>} : memref<8x2x32xf32, #tpu.memory_space<vmem>>, vector<1x2x32xf32>,
    %c4_67 = arith.constant 4 : index
    %c0_68 = arith.constant 0 : index
    %c0_69 = arith.constant 0 : index
    %211 = vector.load %arg10[%c4_67, %c0_68, %c0_69] : memref<8x2x32xf32, #tpu.memory_space<vmem>>, vector<1x2x32xf32>
    %212 = vector.shape_cast %211 : vector<1x2x32xf32> to vector<2x32xf32>
    %213 = vector.shape_cast %207 : vector<2x32xf32> to vector<1x2x32xf32>
    tpu.vector_store %arg10[%c4_67, %c0_68, %c0_69], %213 {strides = array<i32>} : memref<8x2x32xf32, #tpu.memory_space<vmem>>, vector<1x2x32xf32>,
    %214 = tpu.concatenate %198, %207 in 1 : vector<2x32xf32>, vector<2x32xf32> -> vector<2x64xf32>
    %cst_70 = arith.constant dense<0.000000e+00> : vector<2x256xf32>
    %215 = tpu.matmul %214, %13, %cst_70 {dimension_numbers = #tpu.dot_dimension_numbers<[1], [0], [0], [1], [0, 0, 1, 1], [], []>} : vector<2x64xf32>, vector<64x256xf32>, vector<2x256xf32> -> vector<2x256xf32>
    %c4_71 = arith.constant 4 : index
    %c0_72 = arith.constant 0 : index
    %c0_73 = arith.constant 0 : index
    %216 = vector.load %arg7[%c4_71, %c0_72, %c0_73] : memref<8x2x128xf32, #tpu.memory_space<vmem>>, vector<1x2x128xf32>
    %217 = vector.shape_cast %216 : vector<1x2x128xf32> to vector<2x128xf32>
    %218 = vector.extract_strided_slice %215 {offsets = [0, 0], sizes = [2, 128], strides = [1, 1]} : vector<2x256xf32> to vector<2x128xf32>
    %219 = arith.addf %217, %218 : vector<2x128xf32>
    %c3_74 = arith.constant 3 : index
    %c0_75 = arith.constant 0 : index
    %c0_76 = arith.constant 0 : index
    %220 = vector.load %arg8[%c3_74, %c0_75, %c0_76] : memref<8x2x128xf32, #tpu.memory_space<vmem>>, vector<1x2x128xf32>
    %221 = vector.shape_cast %220 : vector<1x2x128xf32> to vector<2x128xf32>
    %222 = vector.extract_strided_slice %215 {offsets = [0, 128], sizes = [2, 128], strides = [1, 1]} : vector<2x256xf32> to vector<2x128xf32>
    %223 = arith.addf %221, %222 : vector<2x128xf32>
    %224 = math.tanh %219 : vector<2x128xf32>
    %225 = arith.negf %219 : vector<2x128xf32>
    %226 = math.exp %225 : vector<2x128xf32>
    %cst_77 = arith.constant 1.000000e+00 : f32
    %227 = vector.broadcast %cst_77 : f32 to vector<2x128xf32>
    %228 = arith.addf %227, %226 : vector<2x128xf32>
    %229 = arith.divf %227, %228 : vector<2x128xf32>
    %230 = arith.select %19, %224, %229 : vector<2x128xi1>, vector<2x128xf32>
    %231 = math.tanh %223 : vector<2x128xf32>
    %232 = arith.negf %223 : vector<2x128xf32>
    %233 = math.exp %232 : vector<2x128xf32>
    %cst_78 = arith.constant 1.000000e+00 : f32
    %234 = vector.broadcast %cst_78 : f32 to vector<2x128xf32>
    %235 = arith.addf %234, %233 : vector<2x128xf32>
    %236 = arith.divf %234, %235 : vector<2x128xf32>
    %237 = arith.select %19, %231, %236 : vector<2x128xi1>, vector<2x128xf32>
    %238 = vector.extract_strided_slice %230 {offsets = [0, 32], sizes = [2, 32], strides = [1, 1]} : vector<2x128xf32> to vector<2x32xf32>
    %239 = arith.mulf %238, %195 : vector<2x32xf32>
    %240 = vector.extract_strided_slice %230 {offsets = [0, 0], sizes = [2, 32], strides = [1, 1]} : vector<2x128xf32> to vector<2x32xf32>
    %241 = vector.extract_strided_slice %230 {offsets = [0, 64], sizes = [2, 32], strides = [1, 1]} : vector<2x128xf32> to vector<2x32xf32>
    %242 = arith.mulf %240, %241 : vector<2x32xf32>
    %243 = arith.addf %239, %242 : vector<2x32xf32>
    %244 = vector.extract_strided_slice %230 {offsets = [0, 96], sizes = [2, 32], strides = [1, 1]} : vector<2x128xf32> to vector<2x32xf32>
    %245 = math.tanh %243 : vector<2x32xf32>
    %246 = arith.mulf %244, %245 : vector<2x32xf32>
    %247 = vector.extract_strided_slice %237 {offsets = [0, 32], sizes = [2, 32], strides = [1, 1]} : vector<2x128xf32> to vector<2x32xf32>
    %248 = arith.mulf %247, %204 : vector<2x32xf32>
    %249 = vector.extract_strided_slice %237 {offsets = [0, 0], sizes = [2, 32], strides = [1, 1]} : vector<2x128xf32> to vector<2x32xf32>
    %250 = vector.extract_strided_slice %237 {offsets = [0, 64], sizes = [2, 32], strides = [1, 1]} : vector<2x128xf32> to vector<2x32xf32>
    %251 = arith.mulf %249, %250 : vector<2x32xf32>
    %252 = arith.addf %248, %251 : vector<2x32xf32>
    %253 = vector.extract_strided_slice %237 {offsets = [0, 96], sizes = [2, 32], strides = [1, 1]} : vector<2x128xf32> to vector<2x32xf32>
    %254 = math.tanh %252 : vector<2x32xf32>
    %255 = arith.mulf %253, %254 : vector<2x32xf32>
    %c4_79 = arith.constant 4 : index
    %c0_80 = arith.constant 0 : index
    %c0_81 = arith.constant 0 : index
    %256 = vector.load %arg9[%c4_79, %c0_80, %c0_81] : memref<8x2x32xf32, #tpu.memory_space<vmem>>, vector<1x2x32xf32>
    %257 = vector.shape_cast %256 : vector<1x2x32xf32> to vector<2x32xf32>
    %258 = vector.shape_cast %246 : vector<2x32xf32> to vector<1x2x32xf32>
    tpu.vector_store %arg9[%c4_79, %c0_80, %c0_81], %258 {strides = array<i32>} : memref<8x2x32xf32, #tpu.memory_space<vmem>>, vector<1x2x32xf32>,
    %c3_82 = arith.constant 3 : index
    %c0_83 = arith.constant 0 : index
    %c0_84 = arith.constant 0 : index
    %259 = vector.load %arg10[%c3_82, %c0_83, %c0_84] : memref<8x2x32xf32, #tpu.memory_space<vmem>>, vector<1x2x32xf32>
    %260 = vector.shape_cast %259 : vector<1x2x32xf32> to vector<2x32xf32>
    %261 = vector.shape_cast %255 : vector<2x32xf32> to vector<1x2x32xf32>
    tpu.vector_store %arg10[%c3_82, %c0_83, %c0_84], %261 {strides = array<i32>} : memref<8x2x32xf32, #tpu.memory_space<vmem>>, vector<1x2x32xf32>,
    %262 = tpu.concatenate %246, %255 in 1 : vector<2x32xf32>, vector<2x32xf32> -> vector<2x64xf32>
    %cst_85 = arith.constant dense<0.000000e+00> : vector<2x256xf32>
    %263 = tpu.matmul %262, %13, %cst_85 {dimension_numbers = #tpu.dot_dimension_numbers<[1], [0], [0], [1], [0, 0, 1, 1], [], []>} : vector<2x64xf32>, vector<64x256xf32>, vector<2x256xf32> -> vector<2x256xf32>
    %c5_86 = arith.constant 5 : index
    %c0_87 = arith.constant 0 : index
    %c0_88 = arith.constant 0 : index
    %264 = vector.load %arg7[%c5_86, %c0_87, %c0_88] : memref<8x2x128xf32, #tpu.memory_space<vmem>>, vector<1x2x128xf32>
    %265 = vector.shape_cast %264 : vector<1x2x128xf32> to vector<2x128xf32>
    %266 = vector.extract_strided_slice %263 {offsets = [0, 0], sizes = [2, 128], strides = [1, 1]} : vector<2x256xf32> to vector<2x128xf32>
    %267 = arith.addf %265, %266 : vector<2x128xf32>
    %c2_89 = arith.constant 2 : index
    %c0_90 = arith.constant 0 : index
    %c0_91 = arith.constant 0 : index
    %268 = vector.load %arg8[%c2_89, %c0_90, %c0_91] : memref<8x2x128xf32, #tpu.memory_space<vmem>>, vector<1x2x128xf32>
    %269 = vector.shape_cast %268 : vector<1x2x128xf32> to vector<2x128xf32>
    %270 = vector.extract_strided_slice %263 {offsets = [0, 128], sizes = [2, 128], strides = [1, 1]} : vector<2x256xf32> to vector<2x128xf32>
    %271 = arith.addf %269, %270 : vector<2x128xf32>
    %272 = math.tanh %267 : vector<2x128xf32>
    %273 = arith.negf %267 : vector<2x128xf32>
    %274 = math.exp %273 : vector<2x128xf32>
    %cst_92 = arith.constant 1.000000e+00 : f32
    %275 = vector.broadcast %cst_92 : f32 to vector<2x128xf32>
    %276 = arith.addf %275, %274 : vector<2x128xf32>
    %277 = arith.divf %275, %276 : vector<2x128xf32>
    %278 = arith.select %19, %272, %277 : vector<2x128xi1>, vector<2x128xf32>
    %279 = math.tanh %271 : vector<2x128xf32>
    %280 = arith.negf %271 : vector<2x128xf32>
    %281 = math.exp %280 : vector<2x128xf32>
    %cst_93 = arith.constant 1.000000e+00 : f32
    %282 = vector.broadcast %cst_93 : f32 to vector<2x128xf32>
    %283 = arith.addf %282, %281 : vector<2x128xf32>
    %284 = arith.divf %282, %283 : vector<2x128xf32>
    %285 = arith.select %19, %279, %284 : vector<2x128xi1>, vector<2x128xf32>
    %286 = vector.extract_strided_slice %278 {offsets = [0, 32], sizes = [2, 32], strides = [1, 1]} : vector<2x128xf32> to vector<2x32xf32>
    %287 = arith.mulf %286, %243 : vector<2x32xf32>
    %288 = vector.extract_strided_slice %278 {offsets = [0, 0], sizes = [2, 32], strides = [1, 1]} : vector<2x128xf32> to vector<2x32xf32>
    %289 = vector.extract_strided_slice %278 {offsets = [0, 64], sizes = [2, 32], strides = [1, 1]} : vector<2x128xf32> to vector<2x32xf32>
    %290 = arith.mulf %288, %289 : vector<2x32xf32>
    %291 = arith.addf %287, %290 : vector<2x32xf32>
    %292 = vector.extract_strided_slice %278 {offsets = [0, 96], sizes = [2, 32], strides = [1, 1]} : vector<2x128xf32> to vector<2x32xf32>
    %293 = math.tanh %291 : vector<2x32xf32>
    %294 = arith.mulf %292, %293 : vector<2x32xf32>
    %295 = vector.extract_strided_slice %285 {offsets = [0, 32], sizes = [2, 32], strides = [1, 1]} : vector<2x128xf32> to vector<2x32xf32>
    %296 = arith.mulf %295, %252 : vector<2x32xf32>
    %297 = vector.extract_strided_slice %285 {offsets = [0, 0], sizes = [2, 32], strides = [1, 1]} : vector<2x128xf32> to vector<2x32xf32>
    %298 = vector.extract_strided_slice %285 {offsets = [0, 64], sizes = [2, 32], strides = [1, 1]} : vector<2x128xf32> to vector<2x32xf32>
    %299 = arith.mulf %297, %298 : vector<2x32xf32>
    %300 = arith.addf %296, %299 : vector<2x32xf32>
    %301 = vector.extract_strided_slice %285 {offsets = [0, 96], sizes = [2, 32], strides = [1, 1]} : vector<2x128xf32> to vector<2x32xf32>
    %302 = math.tanh %300 : vector<2x32xf32>
    %303 = arith.mulf %301, %302 : vector<2x32xf32>
    %c5_94 = arith.constant 5 : index
    %c0_95 = arith.constant 0 : index
    %c0_96 = arith.constant 0 : index
    %304 = vector.load %arg9[%c5_94, %c0_95, %c0_96] : memref<8x2x32xf32, #tpu.memory_space<vmem>>, vector<1x2x32xf32>
    %305 = vector.shape_cast %304 : vector<1x2x32xf32> to vector<2x32xf32>
    %306 = vector.shape_cast %294 : vector<2x32xf32> to vector<1x2x32xf32>
    tpu.vector_store %arg9[%c5_94, %c0_95, %c0_96], %306 {strides = array<i32>} : memref<8x2x32xf32, #tpu.memory_space<vmem>>, vector<1x2x32xf32>,
    %c2_97 = arith.constant 2 : index
    %c0_98 = arith.constant 0 : index
    %c0_99 = arith.constant 0 : index
    %307 = vector.load %arg10[%c2_97, %c0_98, %c0_99] : memref<8x2x32xf32, #tpu.memory_space<vmem>>, vector<1x2x32xf32>
    %308 = vector.shape_cast %307 : vector<1x2x32xf32> to vector<2x32xf32>
    %309 = vector.shape_cast %303 : vector<2x32xf32> to vector<1x2x32xf32>
    tpu.vector_store %arg10[%c2_97, %c0_98, %c0_99], %309 {strides = array<i32>} : memref<8x2x32xf32, #tpu.memory_space<vmem>>, vector<1x2x32xf32>,
    %310 = tpu.concatenate %294, %303 in 1 : vector<2x32xf32>, vector<2x32xf32> -> vector<2x64xf32>
    %cst_100 = arith.constant dense<0.000000e+00> : vector<2x256xf32>
    %311 = tpu.matmul %310, %13, %cst_100 {dimension_numbers = #tpu.dot_dimension_numbers<[1], [0], [0], [1], [0, 0, 1, 1], [], []>} : vector<2x64xf32>, vector<64x256xf32>, vector<2x256xf32> -> vector<2x256xf32>
    %c6_101 = arith.constant 6 : index
    %c0_102 = arith.constant 0 : index
    %c0_103 = arith.constant 0 : index
    %312 = vector.load %arg7[%c6_101, %c0_102, %c0_103] : memref<8x2x128xf32, #tpu.memory_space<vmem>>, vector<1x2x128xf32>
    %313 = vector.shape_cast %312 : vector<1x2x128xf32> to vector<2x128xf32>
    %314 = vector.extract_strided_slice %311 {offsets = [0, 0], sizes = [2, 128], strides = [1, 1]} : vector<2x256xf32> to vector<2x128xf32>
    %315 = arith.addf %313, %314 : vector<2x128xf32>
    %c1_104 = arith.constant 1 : index
    %c0_105 = arith.constant 0 : index
    %c0_106 = arith.constant 0 : index
    %316 = vector.load %arg8[%c1_104, %c0_105, %c0_106] : memref<8x2x128xf32, #tpu.memory_space<vmem>>, vector<1x2x128xf32>
    %317 = vector.shape_cast %316 : vector<1x2x128xf32> to vector<2x128xf32>
    %318 = vector.extract_strided_slice %311 {offsets = [0, 128], sizes = [2, 128], strides = [1, 1]} : vector<2x256xf32> to vector<2x128xf32>
    %319 = arith.addf %317, %318 : vector<2x128xf32>
    %320 = math.tanh %315 : vector<2x128xf32>
    %321 = arith.negf %315 : vector<2x128xf32>
    %322 = math.exp %321 : vector<2x128xf32>
    %cst_107 = arith.constant 1.000000e+00 : f32
    %323 = vector.broadcast %cst_107 : f32 to vector<2x128xf32>
    %324 = arith.addf %323, %322 : vector<2x128xf32>
    %325 = arith.divf %323, %324 : vector<2x128xf32>
    %326 = arith.select %19, %320, %325 : vector<2x128xi1>, vector<2x128xf32>
    %327 = math.tanh %319 : vector<2x128xf32>
    %328 = arith.negf %319 : vector<2x128xf32>
    %329 = math.exp %328 : vector<2x128xf32>
    %cst_108 = arith.constant 1.000000e+00 : f32
    %330 = vector.broadcast %cst_108 : f32 to vector<2x128xf32>
    %331 = arith.addf %330, %329 : vector<2x128xf32>
    %332 = arith.divf %330, %331 : vector<2x128xf32>
    %333 = arith.select %19, %327, %332 : vector<2x128xi1>, vector<2x128xf32>
    %334 = vector.extract_strided_slice %326 {offsets = [0, 32], sizes = [2, 32], strides = [1, 1]} : vector<2x128xf32> to vector<2x32xf32>
    %335 = arith.mulf %334, %291 : vector<2x32xf32>
    %336 = vector.extract_strided_slice %326 {offsets = [0, 0], sizes = [2, 32], strides = [1, 1]} : vector<2x128xf32> to vector<2x32xf32>
    %337 = vector.extract_strided_slice %326 {offsets = [0, 64], sizes = [2, 32], strides = [1, 1]} : vector<2x128xf32> to vector<2x32xf32>
    %338 = arith.mulf %336, %337 : vector<2x32xf32>
    %339 = arith.addf %335, %338 : vector<2x32xf32>
    %340 = vector.extract_strided_slice %326 {offsets = [0, 96], sizes = [2, 32], strides = [1, 1]} : vector<2x128xf32> to vector<2x32xf32>
    %341 = math.tanh %339 : vector<2x32xf32>
    %342 = arith.mulf %340, %341 : vector<2x32xf32>
    %343 = vector.extract_strided_slice %333 {offsets = [0, 32], sizes = [2, 32], strides = [1, 1]} : vector<2x128xf32> to vector<2x32xf32>
    %344 = arith.mulf %343, %300 : vector<2x32xf32>
    %345 = vector.extract_strided_slice %333 {offsets = [0, 0], sizes = [2, 32], strides = [1, 1]} : vector<2x128xf32> to vector<2x32xf32>
    %346 = vector.extract_strided_slice %333 {offsets = [0, 64], sizes = [2, 32], strides = [1, 1]} : vector<2x128xf32> to vector<2x32xf32>
    %347 = arith.mulf %345, %346 : vector<2x32xf32>
    %348 = arith.addf %344, %347 : vector<2x32xf32>
    %349 = vector.extract_strided_slice %333 {offsets = [0, 96], sizes = [2, 32], strides = [1, 1]} : vector<2x128xf32> to vector<2x32xf32>
    %350 = math.tanh %348 : vector<2x32xf32>
    %351 = arith.mulf %349, %350 : vector<2x32xf32>
    %c6_109 = arith.constant 6 : index
    %c0_110 = arith.constant 0 : index
    %c0_111 = arith.constant 0 : index
    %352 = vector.load %arg9[%c6_109, %c0_110, %c0_111] : memref<8x2x32xf32, #tpu.memory_space<vmem>>, vector<1x2x32xf32>
    %353 = vector.shape_cast %352 : vector<1x2x32xf32> to vector<2x32xf32>
    %354 = vector.shape_cast %342 : vector<2x32xf32> to vector<1x2x32xf32>
    tpu.vector_store %arg9[%c6_109, %c0_110, %c0_111], %354 {strides = array<i32>} : memref<8x2x32xf32, #tpu.memory_space<vmem>>, vector<1x2x32xf32>,
    %c1_112 = arith.constant 1 : index
    %c0_113 = arith.constant 0 : index
    %c0_114 = arith.constant 0 : index
    %355 = vector.load %arg10[%c1_112, %c0_113, %c0_114] : memref<8x2x32xf32, #tpu.memory_space<vmem>>, vector<1x2x32xf32>
    %356 = vector.shape_cast %355 : vector<1x2x32xf32> to vector<2x32xf32>
    %357 = vector.shape_cast %351 : vector<2x32xf32> to vector<1x2x32xf32>
    tpu.vector_store %arg10[%c1_112, %c0_113, %c0_114], %357 {strides = array<i32>} : memref<8x2x32xf32, #tpu.memory_space<vmem>>, vector<1x2x32xf32>,
    %358 = tpu.concatenate %342, %351 in 1 : vector<2x32xf32>, vector<2x32xf32> -> vector<2x64xf32>
    %cst_115 = arith.constant dense<0.000000e+00> : vector<2x256xf32>
    %359 = tpu.matmul %358, %13, %cst_115 {dimension_numbers = #tpu.dot_dimension_numbers<[1], [0], [0], [1], [0, 0, 1, 1], [], []>} : vector<2x64xf32>, vector<64x256xf32>, vector<2x256xf32> -> vector<2x256xf32>
    %c7_116 = arith.constant 7 : index
    %c0_117 = arith.constant 0 : index
    %c0_118 = arith.constant 0 : index
    %360 = vector.load %arg7[%c7_116, %c0_117, %c0_118] : memref<8x2x128xf32, #tpu.memory_space<vmem>>, vector<1x2x128xf32>
    %361 = vector.shape_cast %360 : vector<1x2x128xf32> to vector<2x128xf32>
    %362 = vector.extract_strided_slice %359 {offsets = [0, 0], sizes = [2, 128], strides = [1, 1]} : vector<2x256xf32> to vector<2x128xf32>
    %363 = arith.addf %361, %362 : vector<2x128xf32>
    %c0_119 = arith.constant 0 : index
    %c0_120 = arith.constant 0 : index
    %c0_121 = arith.constant 0 : index
    %364 = vector.load %arg8[%c0_119, %c0_120, %c0_121] : memref<8x2x128xf32, #tpu.memory_space<vmem>>, vector<1x2x128xf32>
    %365 = vector.shape_cast %364 : vector<1x2x128xf32> to vector<2x128xf32>
    %366 = vector.extract_strided_slice %359 {offsets = [0, 128], sizes = [2, 128], strides = [1, 1]} : vector<2x256xf32> to vector<2x128xf32>
    %367 = arith.addf %365, %366 : vector<2x128xf32>
    %368 = math.tanh %363 : vector<2x128xf32>
    %369 = arith.negf %363 : vector<2x128xf32>
    %370 = math.exp %369 : vector<2x128xf32>
    %cst_122 = arith.constant 1.000000e+00 : f32
    %371 = vector.broadcast %cst_122 : f32 to vector<2x128xf32>
    %372 = arith.addf %371, %370 : vector<2x128xf32>
    %373 = arith.divf %371, %372 : vector<2x128xf32>
    %374 = arith.select %19, %368, %373 : vector<2x128xi1>, vector<2x128xf32>
    %375 = math.tanh %367 : vector<2x128xf32>
    %376 = arith.negf %367 : vector<2x128xf32>
    %377 = math.exp %376 : vector<2x128xf32>
    %cst_123 = arith.constant 1.000000e+00 : f32
    %378 = vector.broadcast %cst_123 : f32 to vector<2x128xf32>
    %379 = arith.addf %378, %377 : vector<2x128xf32>
    %380 = arith.divf %378, %379 : vector<2x128xf32>
    %381 = arith.select %19, %375, %380 : vector<2x128xi1>, vector<2x128xf32>
    %382 = vector.extract_strided_slice %374 {offsets = [0, 32], sizes = [2, 32], strides = [1, 1]} : vector<2x128xf32> to vector<2x32xf32>
    %383 = arith.mulf %382, %339 : vector<2x32xf32>
    %384 = vector.extract_strided_slice %374 {offsets = [0, 0], sizes = [2, 32], strides = [1, 1]} : vector<2x128xf32> to vector<2x32xf32>
    %385 = vector.extract_strided_slice %374 {offsets = [0, 64], sizes = [2, 32], strides = [1, 1]} : vector<2x128xf32> to vector<2x32xf32>
    %386 = arith.mulf %384, %385 : vector<2x32xf32>
    %387 = arith.addf %383, %386 : vector<2x32xf32>
    %388 = vector.extract_strided_slice %374 {offsets = [0, 96], sizes = [2, 32], strides = [1, 1]} : vector<2x128xf32> to vector<2x32xf32>
    %389 = math.tanh %387 : vector<2x32xf32>
    %390 = arith.mulf %388, %389 : vector<2x32xf32>
    %391 = vector.extract_strided_slice %381 {offsets = [0, 32], sizes = [2, 32], strides = [1, 1]} : vector<2x128xf32> to vector<2x32xf32>
    %392 = arith.mulf %391, %348 : vector<2x32xf32>
    %393 = vector.extract_strided_slice %381 {offsets = [0, 0], sizes = [2, 32], strides = [1, 1]} : vector<2x128xf32> to vector<2x32xf32>
    %394 = vector.extract_strided_slice %381 {offsets = [0, 64], sizes = [2, 32], strides = [1, 1]} : vector<2x128xf32> to vector<2x32xf32>
    %395 = arith.mulf %393, %394 : vector<2x32xf32>
    %396 = arith.addf %392, %395 : vector<2x32xf32>
    %397 = vector.extract_strided_slice %381 {offsets = [0, 96], sizes = [2, 32], strides = [1, 1]} : vector<2x128xf32> to vector<2x32xf32>
    %398 = math.tanh %396 : vector<2x32xf32>
    %399 = arith.mulf %397, %398 : vector<2x32xf32>
    %c7_124 = arith.constant 7 : index
    %c0_125 = arith.constant 0 : index
    %c0_126 = arith.constant 0 : index
    %400 = vector.load %arg9[%c7_124, %c0_125, %c0_126] : memref<8x2x32xf32, #tpu.memory_space<vmem>>, vector<1x2x32xf32>
    %401 = vector.shape_cast %400 : vector<1x2x32xf32> to vector<2x32xf32>
    %402 = vector.shape_cast %390 : vector<2x32xf32> to vector<1x2x32xf32>
    tpu.vector_store %arg9[%c7_124, %c0_125, %c0_126], %402 {strides = array<i32>} : memref<8x2x32xf32, #tpu.memory_space<vmem>>, vector<1x2x32xf32>,
    %c0_127 = arith.constant 0 : index
    %c0_128 = arith.constant 0 : index
    %c0_129 = arith.constant 0 : index
    %403 = vector.load %arg10[%c0_127, %c0_128, %c0_129] : memref<8x2x32xf32, #tpu.memory_space<vmem>>, vector<1x2x32xf32>
    %404 = vector.shape_cast %403 : vector<1x2x32xf32> to vector<2x32xf32>
    %405 = vector.shape_cast %399 : vector<2x32xf32> to vector<1x2x32xf32>
    tpu.vector_store %arg10[%c0_127, %c0_128, %c0_129], %405 {strides = array<i32>} : memref<8x2x32xf32, #tpu.memory_space<vmem>>, vector<1x2x32xf32>,
    %c0_130 = arith.constant 0 : index
    %c0_131 = arith.constant 0 : index
    %c0_132 = arith.constant 0 : index
    %406 = vector.load %arg9[%c0_130, %c0_131, %c0_132] : memref<8x2x32xf32, #tpu.memory_space<vmem>>, vector<8x2x32xf32>
    %c0_133 = arith.constant 0 : index
    %c0_134 = arith.constant 0 : index
    %c0_135 = arith.constant 0 : index
    %407 = vector.load %arg10[%c0_133, %c0_134, %c0_135] : memref<8x2x32xf32, #tpu.memory_space<vmem>>, vector<8x2x32xf32>
    %408 = tpu.concatenate %406, %407 in 2 : vector<8x2x32xf32>, vector<8x2x32xf32> -> vector<8x2x64xf32>
    %409 = vector.shape_cast %408 : vector<8x2x64xf32> to vector<16x64xf32>
    %c0_136 = arith.constant 0 : index
    %c0_137 = arith.constant 0 : index
    %410 = vector.load %arg4[%c0_136, %c0_137] : memref<64x128xf32, #tpu.memory_space<vmem>>, vector<64x128xf32>
    %cst_138 = arith.constant dense<0.000000e+00> : vector<16x128xf32>
    %411 = tpu.matmul %409, %410, %cst_138 {dimension_numbers = #tpu.dot_dimension_numbers<[1], [0], [0], [1], [0, 0, 1, 1], [], []>} : vector<16x64xf32>, vector<64x128xf32>, vector<16x128xf32> -> vector<16x128xf32>
    %c0_139 = arith.constant 0 : index
    %c0_140 = arith.constant 0 : index
    %412 = vector.load %arg5[%c0_139, %c0_140] : memref<1x128xf32, #tpu.memory_space<vmem>>, vector<1x128xf32>
    %413 = vector.broadcast %412 : vector<1x128xf32> to vector<16x128xf32>
    %414 = arith.addf %411, %413 : vector<16x128xf32>
    %415 = vector.shape_cast %414 : vector<16x128xf32> to vector<8x2x128xf32>
    %c0_141 = arith.constant 0 : index
    %c0_142 = arith.constant 0 : index
    %c0_143 = arith.constant 0 : index
    %416 = vector.load %arg6[%c0_141, %c0_142, %c0_143] : memref<8x2x128xf32, #tpu.memory_space<vmem>>, vector<8x2x128xf32>
    tpu.vector_store %arg6[%c0_141, %c0_142, %c0_143], %415 {strides = array<i32>} : memref<8x2x128xf32, #tpu.memory_space<vmem>>, vector<8x2x128xf32>,
    return
  }
}

</mosaic_0001>

<llo_original>
// kernel: tpu_custom_call.1
$region0: #{tpu_custom_call.1}
  #allocation0 [shape = 'u32[]', space=smem, size = 0x4, offset = 0x4, fixed_abs, tag = 'smem constant byte address 0x4 - core index']
  #allocation1 [shape = 'u32[144,128]{1,0:T(1,128)}', space=vmem, size = 0x12000, scoped, tag = 'internal scratch']
  #allocation2 [shape = 'f32[8,2,128]{2,1,0:T(2,128)}', space=vmem, size = 0x2000, scoped, tag = 'scratch operand']
  #allocation3 [shape = 'f32[8,2,128]{2,1,0:T(2,128)}', space=vmem, size = 0x2000, scoped, tag = 'scratch operand']
  #allocation4 [shape = 'f32[8,2,32]{2,1,0:T(2,128)}', space=vmem, size = 0x2000, scoped, tag = 'scratch operand']
  #allocation5 [shape = 'f32[8,2,32]{2,1,0:T(2,128)}', space=vmem, size = 0x2000, scoped, tag = 'scratch operand']
  %s0 = inlined_call_operand.hbm [shape: f32[8,2,32], index: 0, kind: input, shape index: {}]
  %s1 = inlined_call_operand.hbm [shape: f32[32,256], index: 1, kind: input, shape index: {}]
  %s2 = inlined_call_operand.vmem [shape: f32[1,256], index: 2, kind: input, shape index: {}]
  %s3 = inlined_call_operand.hbm [shape: f32[64,256], index: 3, kind: input, shape index: {}]
  %s4 = inlined_call_operand.hbm [shape: f32[64,128], index: 4, kind: input, shape index: {}]
  %s5 = inlined_call_operand.vmem [shape: f32[1,128], index: 5, kind: input, shape index: {}]
  %s6 = inlined_call_operand.hbm [shape: f32[8,2,128], index: 6, kind: output, shape index: {}]
  %s7 = sld [smem:[#allocation0]]
  $region50: #{tpu_custom_call.1} parent=0
    _
  %s9 = ssub.s32 1, %s7
  %s10 = scalar_select 0, %s9, %s7
  $region1: #{tpu_custom_call.1} parent=0
    #allocation6 [shape = 'u8[8192]{0}', space=vmem, size = 0x2000, scoped, tag = 'input window, operand 0, single buffered']
    #allocation7 [shape = 's32[1]{0}', space=sflag, size = 0x4, scoped, tag = 'scoped memory for tpu_custom_call.1']
    #allocation8 [shape = 's32[1]{0}', space=sflag, size = 0x4, scoped, tag = 'scoped memory for tpu_custom_call.1']
    #allocation9 [shape = 'u8[32768]{0}', space=vmem, size = 0x8000, scoped, tag = 'input window, operand 1, single buffered']
    #allocation10 [shape = 's32[1]{0}', space=sflag, size = 0x4, scoped, tag = 'scoped memory for tpu_custom_call.1']
    #allocation11 [shape = 'u8[65536]{0}', space=vmem, size = 0x10000, scoped, tag = 'input window, operand 3, single buffered']
    #allocation12 [shape = 'u8[32768]{0}', space=vmem, size = 0x8000, scoped, tag = 'input window, operand 4, single buffered']
    #allocation13 [shape = 's32[1]{0}', space=sflag, size = 0x4, scoped, tag = 'scoped memory for tpu_custom_call.1']
    #allocation14 [shape = 'u8[8192]{0}', space=vmem, size = 0x2000, scoped, tag = 'output window, operand 0, single buffered']
    %11 = vsyncpa [#allocation7], 0
    %12 = vsyncpa [#allocation10], 0
    %13 = vsyncpa [#allocation13], 0
    %14 = vsyncpa [#allocation8], 0
    // Predicated region
    $region2: #{tpu_custom_call.1} parent=1 // pred_check
      _
    $region3: #{tpu_custom_call.1} parent=1 // pred_check_branch
      %16 = sbr.rel (0) target = $region5
    $region4: #{tpu_custom_call.1} parent=1 // pred_region
      %s18 = ssub.s32 256, 256
      %19 = vsyncadd [#allocation7], %s18
      %s20 = sshll.u32 [#allocation6], 4
      %s21 = int_to_ptr.vmem [resolvable:$true] %s20
      %26 = dma.hbm_to_vmem [thread:$0]  %s0, 256, %s21, [#allocation7], 32, 32, 2
    $region5: #{tpu_custom_call.1} parent=1 // pred_fallthru
      _
    // Predicated region
    $region6: #{tpu_custom_call.1} parent=1 // pred_check
      _
    $region7: #{tpu_custom_call.1} parent=1 // pred_check_branch
      %28 = sbr.rel (0) target = $region9
    $region8: #{tpu_custom_call.1} parent=1 // pred_region
      %s30 = ssub.s32 1024, 1024
      %31 = vsyncadd [#allocation10], %s30
      %s32 = sshll.u32 [#allocation9], 4
      %s33 = int_to_ptr.vmem [resolvable:$true] %s32
      %38 = dma.hbm_to_vmem [thread:$0]  %s1, 1024, %s33, [#allocation10], 256, 256, 16
    $region9: #{tpu_custom_call.1} parent=1 // pred_fallthru
      _
    // Predicated region
    $region10: #{tpu_custom_call.1} parent=1 // pred_check
      _
    $region11: #{tpu_custom_call.1} parent=1 // pred_check_branch
      %40 = sbr.rel (0) target = $region13
    $region12: #{tpu_custom_call.1} parent=1 // pred_region
      _
    $region13: #{tpu_custom_call.1} parent=1 // pred_fallthru
      _
    // Predicated region
    $region14: #{tpu_custom_call.1} parent=1 // pred_check
      _
    $region15: #{tpu_custom_call.1} parent=1 // pred_check_branch
      %42 = sbr.rel (0) target = $region17
    $region16: #{tpu_custom_call.1} parent=1 // pred_region
      %s44 = ssub.s32 2048, 2048
      %45 = vsyncadd [#allocation10], %s44
      %s46 = sshll.u32 [#allocation11], 4
      %s47 = int_to_ptr.vmem [resolvable:$true] %s46
      %52 = dma.hbm_to_vmem [thread:$0]  %s3, 2048, %s47, [#allocation10], 256, 256, 16
    $region17: #{tpu_custom_call.1} parent=1 // pred_fallthru
      _
    // Predicated region
    $region18: #{tpu_custom_call.1} parent=1 // pred_check
      _
    $region19: #{tpu_custom_call.1} parent=1 // pred_check_branch
      %54 = sbr.rel (0) target = $region21
    $region20: #{tpu_custom_call.1} parent=1 // pred_region
      %s56 = ssub.s32 1024, 1024
      %57 = vsyncadd [#allocation13], %s56
      %s58 = sshll.u32 [#allocation12], 4
      %s59 = int_to_ptr.vmem [resolvable:$true] %s58
      %64 = dma.hbm_to_vmem [thread:$0]  %s4, 1024, %s59, [#allocation13], 128, 128, 8
    $region21: #{tpu_custom_call.1} parent=1 // pred_fallthru
      _
    // Predicated region
    $region22: #{tpu_custom_call.1} parent=1 // pred_check
      _
    $region23: #{tpu_custom_call.1} parent=1 // pred_check_branch
      %66 = sbr.rel (0) target = $region25
    $region24: #{tpu_custom_call.1} parent=1 // pred_region
      _
    $region25: #{tpu_custom_call.1} parent=1 // pred_fallthru
      _
    // Predicated region
    $region26: #{tpu_custom_call.1} parent=1 // pred_check
      _
    $region27: #{tpu_custom_call.1} parent=1 // pred_check_branch
      %68 = sbr.rel (0) target = $region29
    $region28: #{tpu_custom_call.1} parent=1 // pred_region
      %69 = dma.done [#allocation7], 256
    $region29: #{tpu_custom_call.1} parent=1 // pred_fallthru
      _
    // Predicated region
    $region30: #{tpu_custom_call.1} parent=1 // pred_check
      _
    $region31: #{tpu_custom_call.1} parent=1 // pred_check_branch
      %71 = sbr.rel (0) target = $region33
    $region32: #{tpu_custom_call.1} parent=1 // pred_region
      %72 = dma.done [#allocation10], 1024
    $region33: #{tpu_custom_call.1} parent=1 // pred_fallthru
      _
    // Predicated region
    $region34: #{tpu_custom_call.1} parent=1 // pred_check
      _
    $region35: #{tpu_custom_call.1} parent=1 // pred_check_branch
      %74 = sbr.rel (0) target = $region37
    $region36: #{tpu_custom_call.1} parent=1 // pred_region
      %75 = dma.done [#allocation10], 2048
    $region37: #{tpu_custom_call.1} parent=1 // pred_fallthru
      _
    // Predicated region
    $region38: #{tpu_custom_call.1} parent=1 // pred_check
      _
    $region39: #{tpu_custom_call.1} parent=1 // pred_check_branch
      %77 = sbr.rel (0) target = $region41
    $region40: #{tpu_custom_call.1} parent=1 // pred_region
      %78 = dma.done [#allocation13], 1024
    $region41: #{tpu_custom_call.1} parent=1 // pred_fallthru
      _
    %v79 = vld [vmem:[#allocation6] sm:$0x3]
    %v80 = vld [vmem:[#allocation6 + $0x2] sm:$0x3]
    %v81 = vld [vmem:[#allocation6 + $0x4] sm:$0x3]
    %v82 = vld [vmem:[#allocation6 + $0x6] sm:$0x3]
    %v83 = vld [vmem:[#allocation6 + $0x8] sm:$0x3]
    %v84 = vld [vmem:[#allocation6 + $0xa] sm:$0x3]
    %v85 = vld [vmem:[#allocation6 + $0xc] sm:$0x3]
    %v86 = vld [vmem:[#allocation6 + $0xe] sm:$0x3]
    %v87 = vld [vmem:[#allocation9] sm:$0xff]
    %v88 = vld [vmem:[#allocation9 + $0x8] sm:$0xff]
    %v89 = vld [vmem:[#allocation9 + $0x10] sm:$0xff]
    %v90 = vld [vmem:[#allocation9 + $0x18] sm:$0xff]
    %v91 = vld [vmem:[#allocation9 + $0x20] sm:$0xff]
    %v92 = vld [vmem:[#allocation9 + $0x28] sm:$0xff]
    %v93 = vld [vmem:[#allocation9 + $0x30] sm:$0xff]
    %v94 = vld [vmem:[#allocation9 + $0x38] sm:$0xff]
    %v95 = vld [vmem:[%s2] sm:$0x3]
    %v97 = vlaneseq
    %v98 = vshrl.u32 %v97, 7
    %v99 = vsub.s32 0, %v98
    %v100 = vrot.slane %v95, %v99
    %v101 = vlaneseq
    %v102 = vshrl.u32 %v101, 7
    %v103 = vsub.s32 1, %v102
    %v104 = vrot.slane %v95, %v103
    %v115 = vcombine.low %v79, %v80
    %v116 = vcombine.low %v81, %v82
    %v118 = vunpack.c.l.s4 1983009808
    %v119 = vunpack.c.0.s8 %v118
    %v120 = vlaneseq
    %v121 = vshrl.u32 %v120, 7
    %v122 = vsub.s32 %v119, %v121
    %v123 = vrot.slane %v115, %v122
    %v125 = vunpack.c.l.s4 1983009808
    %v126 = vunpack.c.0.s8 %v125
    %v127 = vlaneseq
    %v128 = vshrl.u32 %v127, 7
    %v129 = vsub.s32 %v126, %v128
    %v130 = vrot.slane %v116, %v129
    %v131 = vcombine.low %v123, %v130
    %v132 = vcombine.low %v83, %v84
    %v133 = vcombine.low %v85, %v86
    %v135 = vunpack.c.l.s4 1983009808
    %v136 = vunpack.c.0.s8 %v135
    %v137 = vlaneseq
    %v138 = vshrl.u32 %v137, 7
    %v139 = vsub.s32 %v136, %v138
    %v140 = vrot.slane %v132, %v139
    %v142 = vunpack.c.l.s4 1983009808
    %v143 = vunpack.c.0.s8 %v142
    %v144 = vlaneseq
    %v145 = vshrl.u32 %v144, 7
    %v146 = vsub.s32 %v143, %v145
    %v147 = vrot.slane %v133, %v146
    %v148 = vcombine.low %v140, %v147
    %vm149 = vcmask 261120
    %v150 = vsel %vm149, %v131, 0
    %v152 = vsel %vm149, %v148, 0
    %154 = vmatprep.subr.mxu0 %v88
    %155 = vmatpush1.msra.mxu0 %v87
    %156 = vmatprep.subr.mxu0 %v90
    %157 = vmatpush1.msra.mxu0 %v89
    %158 = vmatprep.subr.mxu0 %v92
    %159 = vmatpush1.msra.mxu0 %v91
    %160 = vmatprep.subr.mxu0 %v94
    %161 = vmatpush1.msra.mxu0 %v93
    %162 = vmatprep.subr.mxu0 0.0
    %163 = vmatpush1.msra.mxu0 0.0
    %164 = vmatprep.subr.mxu0 0.0
    %165 = vmatpush1.msra.mxu0 0.0
    %166 = vmatprep.subr.mxu0 0.0
    %167 = vmatpush1.msra.mxu0 0.0
    %168 = vmatprep.subr.mxu0 0.0
    %169 = vmatpush1.msra.mxu0 0.0
    %170 = vmatprep.subr.mxu0 0.0
    %171 = vmatpush1.msra.mxu0 0.0
    %172 = vmatprep.subr.mxu0 0.0
    %173 = vmatpush1.msra.mxu0 0.0
    %174 = vmatprep.subr.mxu0 0.0
    %175 = vmatpush1.msra.mxu0 0.0
    %176 = vmatprep.subr.mxu0 0.0
    %177 = vmatpush1.msra.mxu0 0.0
    %178 = vmatprep.subr.mxu0 0.0
    %179 = vmatpush1.msra.mxu0 0.0
    %180 = vmatprep.subr.mxu0 0.0
    %181 = vmatpush1.msra.mxu0 0.0
    %182 = vmatprep.subr.mxu0 0.0
    %183 = vmatpush1.msra.mxu0 0.0
    %184 = vmatprep.subr.mxu0 0.0
    %185 = vmatpush1.msra.mxu0 0.0
    %186 = vmatprep.subr.mxu0 0.0
    %187 = vmatpush1.msra.mxu0 0.0
    %188 = vmatprep.subr.mxu0 0.0
    %189 = vmatpush1.msra.mxu0 0.0
    %190 = vmatprep.subr.mxu0 0.0
    %191 = vmatpush1.msra.mxu0 0.0
    %192 = vmatprep.subr.mxu0 0.0
    %193 = vmatpush1.msra.mxu0 0.0
    %194 = vmatprep.subr.mxu0 0.0
    %195 = vmatpush1.msra.mxu0 0.0
    %196 = vmatprep.subr.mxu0 0.0
    %197 = vmatpush1.msra.mxu0 0.0
    %198 = vmatprep.subr.mxu0 0.0
    %199 = vmatpush1.msra.mxu0 0.0
    %200 = vmatprep.subr.mxu0 0.0
    %201 = vmatpush1.msra.mxu0 0.0
    %202 = vmatprep.subr.mxu0 0.0
    %203 = vmatpush1.msra.mxu0 0.0
    %204 = vmatprep.subr.mxu0 0.0
    %205 = vmatpush1.msra.mxu0 0.0
    %206 = vmatprep.subr.mxu0 0.0
    %207 = vmatpush1.msra.mxu0 0.0
    %208 = vmatprep.subr.mxu0 0.0
    %209 = vmatpush1.msra.mxu0 0.0
    %210 = vmatprep.subr.mxu0 0.0
    %211 = vmatpush1.msra.mxu0 0.0
    %212 = vmatprep.subr.mxu0 0.0
    %213 = vmatpush1.msra.mxu0 0.0
    %214 = vmatprep.subr.mxu0 0.0
    %215 = vmatpush1.msra.mxu0 0.0
    %216 = vmatprep.subr.mxu0 0.0
    %217 = vmatpush1.msra.mxu0 0.0
    %218 = vmatprep.mubr.f32.mxu0 0.0
    %219 = vmatmul.mubr.f32.gmra.mrb[0].mxu0 %v150
    %v220 = vpop.f32.mrb[0].mxu0
    %v221 = vadd.f32 %v100, %v220
    %v222 = vpop.f32.mrb[0].mxu0
    %v223 = vadd.f32 %v104, %v222
    %224 = vmatprep.mubr.f32.mxu0 0.0
    %225 = vmatmul.mubr.f32.gmra.mrb[0].mxu0 %v152
    %v226 = vpop.f32.mrb[0].mxu0
    %v227 = vadd.f32 %v100, %v226
    %v228 = vpop.f32.mrb[0].mxu0
    %v229 = vadd.f32 %v104, %v228
    %230 = vdwg.mxu0
    %v233 = vcombine.high %v221, %v221
    %v235 = vunpack.c.l.s4 1983009808
    %v236 = vunpack.c.0.s8 %v235
    %v237 = vlaneseq
    %v238 = vshrl.u32 %v237, 7
    %v239 = vsub.s32 %v236, %v238
    %v240 = vrot.slane %v221, %v239
    %v242 = vunpack.c.l.s4 1983009808
    %v243 = vunpack.c.0.s8 %v242
    %v244 = vlaneseq
    %v245 = vshrl.u32 %v244, 7
    %v246 = vsub.s32 %v243, %v245
    %v247 = vrot.slane %v233, %v246
    %v248 = vcombine.high %v240, %v240
    %v249 = vcombine.high %v247, %v247
    %v250 = vcombine.high %v227, %v227
    %v252 = vunpack.c.l.s4 1983009808
    %v253 = vunpack.c.0.s8 %v252
    %v254 = vlaneseq
    %v255 = vshrl.u32 %v254, 7
    %v256 = vsub.s32 %v253, %v255
    %v257 = vrot.slane %v227, %v256
    %v259 = vunpack.c.l.s4 1983009808
    %v260 = vunpack.c.0.s8 %v259
    %v261 = vlaneseq
    %v262 = vshrl.u32 %v261, 7
    %v263 = vsub.s32 %v260, %v262
    %v264 = vrot.slane %v250, %v263
    %v265 = vcombine.high %v257, %v257
    %v266 = vcombine.high %v264, %v264
    %275 = vst [vmem:[#allocation2] sm:$0x3] %v240
    %276 = vst [vmem:[#allocation2 + $0x2] sm:$0x3] %v248
    %277 = vst [vmem:[#allocation2 + $0x4] sm:$0x3] %v247
    %278 = vst [vmem:[#allocation2 + $0x6] sm:$0x3] %v249
    %279 = vst [vmem:[#allocation2 + $0x8] sm:$0x3] %v257
    %280 = vst [vmem:[#allocation2 + $0xa] sm:$0x3] %v265
    %281 = vst [vmem:[#allocation2 + $0xc] sm:$0x3] %v264
    %282 = vst [vmem:[#allocation2 + $0xe] sm:$0x3] %v266
    %v285 = vcombine.high %v223, %v223
    %v287 = vunpack.c.l.s4 1983009808
    %v288 = vunpack.c.0.s8 %v287
    %v289 = vlaneseq
    %v290 = vshrl.u32 %v289, 7
    %v291 = vsub.s32 %v288, %v290
    %v292 = vrot.slane %v223, %v291
    %v294 = vunpack.c.l.s4 1983009808
    %v295 = vunpack.c.0.s8 %v294
    %v296 = vlaneseq
    %v297 = vshrl.u32 %v296, 7
    %v298 = vsub.s32 %v295, %v297
    %v299 = vrot.slane %v285, %v298
    %v300 = vcombine.high %v292, %v292
    %v301 = vcombine.high %v299, %v299
    %v302 = vcombine.high %v229, %v229
    %v304 = vunpack.c.l.s4 1983009808
    %v305 = vunpack.c.0.s8 %v304
    %v306 = vlaneseq
    %v307 = vshrl.u32 %v306, 7
    %v308 = vsub.s32 %v305, %v307
    %v309 = vrot.slane %v229, %v308
    %v311 = vunpack.c.l.s4 1983009808
    %v312 = vunpack.c.0.s8 %v311
    %v313 = vlaneseq
    %v314 = vshrl.u32 %v313, 7
    %v315 = vsub.s32 %v312, %v314
    %v316 = vrot.slane %v302, %v315
    %v317 = vcombine.high %v309, %v309
    %v318 = vcombine.high %v316, %v316
    %327 = vst [vmem:[#allocation3] sm:$0x3] %v292
    %328 = vst [vmem:[#allocation3 + $0x2] sm:$0x3] %v300
    %329 = vst [vmem:[#allocation3 + $0x4] sm:$0x3] %v299
    %330 = vst [vmem:[#allocation3 + $0x6] sm:$0x3] %v301
    %331 = vst [vmem:[#allocation3 + $0x8] sm:$0x3] %v309
    %332 = vst [vmem:[#allocation3 + $0xa] sm:$0x3] %v317
    %333 = vst [vmem:[#allocation3 + $0xc] sm:$0x3] %v316
    %334 = vst [vmem:[#allocation3 + $0xe] sm:$0x3] %v318
    %v335 = vld [vmem:[#allocation11] sm:$0xff]
    %v336 = vld [vmem:[#allocation11 + $0x8] sm:$0xff]
    %v337 = vld [vmem:[#allocation11 + $0x10] sm:$0xff]
    %v338 = vld [vmem:[#allocation11 + $0x18] sm:$0xff]
    %v339 = vld [vmem:[#allocation11 + $0x20] sm:$0xff]
    %v340 = vld [vmem:[#allocation11 + $0x28] sm:$0xff]
    %v341 = vld [vmem:[#allocation11 + $0x30] sm:$0xff]
    %v342 = vld [vmem:[#allocation11 + $0x38] sm:$0xff]
    %v343 = vld [vmem:[#allocation11 + $0x40] sm:$0xff]
    %v344 = vld [vmem:[#allocation11 + $0x48] sm:$0xff]
    %v345 = vld [vmem:[#allocation11 + $0x50] sm:$0xff]
    %v346 = vld [vmem:[#allocation11 + $0x58] sm:$0xff]
    %v347 = vld [vmem:[#allocation11 + $0x60] sm:$0xff]
    %v348 = vld [vmem:[#allocation11 + $0x68] sm:$0xff]
    %v349 = vld [vmem:[#allocation11 + $0x70] sm:$0xff]
    %v350 = vld [vmem:[#allocation11 + $0x78] sm:$0xff]
    %v351 = vlaneseq
    %v352 = vand.u32 %v351, 127
    %vm353 = vcmp.ge.s32.totalorder %v352, 64
    %vm354 = vcmp.lt.s32.totalorder %v352, 96
    %vm355 = vmand %vm353, %vm354
    %vm356 = vcmask 523264
    %v358 = vsel %vm356, 0.0, 0
    %360 = vmatprep.subr.mxu0 %v336
    %361 = vmatpush1.msra.mxu0 %v335
    %362 = vmatprep.subr.mxu0 %v338
    %363 = vmatpush1.msra.mxu0 %v337
    %364 = vmatprep.subr.mxu0 %v340
    %365 = vmatpush1.msra.mxu0 %v339
    %366 = vmatprep.subr.mxu0 %v342
    %367 = vmatpush1.msra.mxu0 %v341
    %368 = vmatprep.subr.mxu0 %v344
    %369 = vmatpush1.msra.mxu0 %v343
    %370 = vmatprep.subr.mxu0 %v346
    %371 = vmatpush1.msra.mxu0 %v345
    %372 = vmatprep.subr.mxu0 %v348
    %373 = vmatpush1.msra.mxu0 %v347
    %374 = vmatprep.subr.mxu0 %v350
    %375 = vmatpush1.msra.mxu0 %v349
    %376 = vmatprep.subr.mxu0 0.0
    %377 = vmatpush1.msra.mxu0 0.0
    %378 = vmatprep.subr.mxu0 0.0
    %379 = vmatpush1.msra.mxu0 0.0
    %380 = vmatprep.subr.mxu0 0.0
    %381 = vmatpush1.msra.mxu0 0.0
    %382 = vmatprep.subr.mxu0 0.0
    %383 = vmatpush1.msra.mxu0 0.0
    %384 = vmatprep.subr.mxu0 0.0
    %385 = vmatpush1.msra.mxu0 0.0
    %386 = vmatprep.subr.mxu0 0.0
    %387 = vmatpush1.msra.mxu0 0.0
    %388 = vmatprep.subr.mxu0 0.0
    %389 = vmatpush1.msra.mxu0 0.0
    %390 = vmatprep.subr.mxu0 0.0
    %391 = vmatpush1.msra.mxu0 0.0
    %392 = vmatprep.subr.mxu0 0.0
    %393 = vmatpush1.msra.mxu0 0.0
    %394 = vmatprep.subr.mxu0 0.0
    %395 = vmatpush1.msra.mxu0 0.0
    %396 = vmatprep.subr.mxu0 0.0
    %397 = vmatpush1.msra.mxu0 0.0
    %398 = vmatprep.subr.mxu0 0.0
    %399 = vmatpush1.msra.mxu0 0.0
    %400 = vmatprep.subr.mxu0 0.0
    %401 = vmatpush1.msra.mxu0 0.0
    %402 = vmatprep.subr.mxu0 0.0
    %403 = vmatpush1.msra.mxu0 0.0
    %404 = vmatprep.subr.mxu0 0.0
    %405 = vmatpush1.msra.mxu0 0.0
    %406 = vmatprep.subr.mxu0 0.0
    %407 = vmatpush1.msra.mxu0 0.0
    %408 = vmatprep.subr.mxu0 0.0
    %409 = vmatpush1.msra.mxu0 0.0
    %410 = vmatprep.subr.mxu0 0.0
    %411 = vmatpush1.msra.mxu0 0.0
    %412 = vmatprep.subr.mxu0 0.0
    %413 = vmatpush1.msra.mxu0 0.0
    %414 = vmatprep.subr.mxu0 0.0
    %415 = vmatpush1.msra.mxu0 0.0
    %416 = vmatprep.subr.mxu0 0.0
    %417 = vmatpush1.msra.mxu0 0.0
    %418 = vmatprep.subr.mxu0 0.0
    %419 = vmatpush1.msra.mxu0 0.0
    %420 = vmatprep.subr.mxu0 0.0
    %421 = vmatpush1.msra.mxu0 0.0
    %422 = vmatprep.subr.mxu0 0.0
    %423 = vmatpush1.msra.mxu0 0.0
    %424 = vmatprep.mubr.f32.mxu0 0.0
    %425 = vmatmul.mubr.f32.gmra.mrb[0].mxu0 %v358
    %v426 = vpop.f32.mrb[0].mxu0
    %v427 = vadd.f32 0.0, %v426
    %v428 = vpop.f32.mrb[0].mxu0
    %v429 = vadd.f32 0.0, %v428
    %430 = vdwg.mxu0
    %v431 = vld [vmem:[#allocation2] sm:$0x3]
    %v432 = vadd.f32 %v431, %v427
    %s433 = scalar_lea.vmem [#allocation3], 14
    %v434 = vld [vmem:[%s433] sm:$0x3]
    %v435 = vadd.f32 %v434, %v429
    %v436 = vtanh.pop %v432
    %v437 = vxor.u32 %v432, 2147483648
    %v438 = vmul.f32 %v437, 1.442695
    %v439 = vpow.pop %v438
    %v440 = vadd.f32 %v439, 1.0
    %v441 = vrcp.pop %v440
    %v442 = vmul.f32 1.0, %v441
    %v443 = vsel %vm355, %v436, %v442
    %v444 = vtanh.pop %v435
    %v445 = vxor.u32 %v435, 2147483648
    %v446 = vmul.f32 %v445, 1.442695
    %v447 = vpow.pop %v446
    %v448 = vadd.f32 %v447, 1.0
    %v449 = vrcp.pop %v448
    %v450 = vmul.f32 1.0, %v449
    %v451 = vsel %vm355, %v444, %v450
    %v452 = vmul.f32 %v443, 0.0
    %454 = vrot.lane.b32.xlu0 %v443, 64
    %v455 = vpop.permute.xlu0 %454
    %v457 = vmul.f32 %v443, %v455
    %459 = vrot.lane.b32.xlu0 %v457, 32
    %v460 = vpop.permute.xlu0 %459
    %v462 = vadd.f32 %v452, %v460
    %v463 = vtanh.pop %v462
    %465 = vrot.lane.b32.xlu0 %v463, 64
    %v466 = vpop.permute.xlu0 %465
    %v468 = vmul.f32 %v443, %v466
    %v469 = vmul.f32 %v451, 0.0
    %471 = vrot.lane.b32.xlu0 %v451, 64
    %v472 = vpop.permute.xlu0 %471
    %v474 = vmul.f32 %v451, %v472
    %476 = vrot.lane.b32.xlu0 %v474, 32
    %v477 = vpop.permute.xlu0 %476
    %v479 = vadd.f32 %v469, %v477
    %v480 = vtanh.pop %v479
    %482 = vrot.lane.b32.xlu0 %v480, 64
    %v483 = vpop.permute.xlu0 %482
    %v485 = vmul.f32 %v451, %v483
    %487 = vrot.lane.b32.xlu0 %v468, 32
    %v488 = vpop.permute.xlu0 %487
    %vm490 = vcmask 254976
    %491 = vst.msk [vmem:[#allocation4] sm:$0x3] %vm490, %v488
    %493 = vrot.lane.b32.xlu0 %v485, 32
    %v494 = vpop.permute.xlu0 %493
    %s496 = scalar_lea.vmem [#allocation5], 14
    %497 = vst.msk [vmem:[%s496] sm:$0x3] %vm490, %v494
    %498 = vrot.lane.b32.xlu0 %v485, 64
    %v499 = vpop.permute.xlu0 %498
    %v501 = vsel %vm149, %v488, %v499
    %v503 = vsel %vm356, %v501, 0
    %505 = vmatprep.subr.mxu0 %v336
    %506 = vmatpush1.msra.mxu0 %v335
    %507 = vmatprep.subr.mxu0 %v338
    %508 = vmatpush1.msra.mxu0 %v337
    %509 = vmatprep.subr.mxu0 %v340
    %510 = vmatpush1.msra.mxu0 %v339
    %511 = vmatprep.subr.mxu0 %v342
    %512 = vmatpush1.msra.mxu0 %v341
    %513 = vmatprep.subr.mxu0 %v344
    %514 = vmatpush1.msra.mxu0 %v343
    %515 = vmatprep.subr.mxu0 %v346
    %516 = vmatpush1.msra.mxu0 %v345
    %517 = vmatprep.subr.mxu0 %v348
    %518 = vmatpush1.msra.mxu0 %v347
    %519 = vmatprep.subr.mxu0 %v350
    %520 = vmatpush1.msra.mxu0 %v349
    %521 = vmatprep.subr.mxu0 0.0
    %522 = vmatpush1.msra.mxu0 0.0
    %523 = vmatprep.subr.mxu0 0.0
    %524 = vmatpush1.msra.mxu0 0.0
    %525 = vmatprep.subr.mxu0 0.0
    %526 = vmatpush1.msra.mxu0 0.0
    %527 = vmatprep.subr.mxu0 0.0
    %528 = vmatpush1.msra.mxu0 0.0
    %529 = vmatprep.subr.mxu0 0.0
    %530 = vmatpush1.msra.mxu0 0.0
    %531 = vmatprep.subr.mxu0 0.0
    %532 = vmatpush1.msra.mxu0 0.0
    %533 = vmatprep.subr.mxu0 0.0
    %534 = vmatpush1.msra.mxu0 0.0
    %535 = vmatprep.subr.mxu0 0.0
    %536 = vmatpush1.msra.mxu0 0.0
    %537 = vmatprep.subr.mxu0 0.0
    %538 = vmatpush1.msra.mxu0 0.0
    %539 = vmatprep.subr.mxu0 0.0
    %540 = vmatpush1.msra.mxu0 0.0
    %541 = vmatprep.subr.mxu0 0.0
    %542 = vmatpush1.msra.mxu0 0.0
    %543 = vmatprep.subr.mxu0 0.0
    %544 = vmatpush1.msra.mxu0 0.0
    %545 = vmatprep.subr.mxu0 0.0
    %546 = vmatpush1.msra.mxu0 0.0
    %547 = vmatprep.subr.mxu0 0.0
    %548 = vmatpush1.msra.mxu0 0.0
    %549 = vmatprep.subr.mxu0 0.0
    %550 = vmatpush1.msra.mxu0 0.0
    %551 = vmatprep.subr.mxu0 0.0
    %552 = vmatpush1.msra.mxu0 0.0
    %553 = vmatprep.subr.mxu0 0.0
    %554 = vmatpush1.msra.mxu0 0.0
    %555 = vmatprep.subr.mxu0 0.0
    %556 = vmatpush1.msra.mxu0 0.0
    %557 = vmatprep.subr.mxu0 0.0
    %558 = vmatpush1.msra.mxu0 0.0
    %559 = vmatprep.subr.mxu0 0.0
    %560 = vmatpush1.msra.mxu0 0.0
    %561 = vmatprep.subr.mxu0 0.0
    %562 = vmatpush1.msra.mxu0 0.0
    %563 = vmatprep.subr.mxu0 0.0
    %564 = vmatpush1.msra.mxu0 0.0
    %565 = vmatprep.subr.mxu0 0.0
    %566 = vmatpush1.msra.mxu0 0.0
    %567 = vmatprep.subr.mxu0 0.0
    %568 = vmatpush1.msra.mxu0 0.0
    %569 = vmatprep.mubr.f32.mxu0 0.0
    %570 = vmatmul.mubr.f32.gmra.mrb[0].mxu0 %v503
    %v571 = vpop.f32.mrb[0].mxu0
    %v572 = vadd.f32 0.0, %v571
    %v573 = vpop.f32.mrb[0].mxu0
    %v574 = vadd.f32 0.0, %v573
    %575 = vdwg.mxu0
    %s576 = scalar_lea.vmem [#allocation2], 2
    %v577 = vld [vmem:[%s576] sm:$0x3]
    %v578 = vadd.f32 %v577, %v572
    %s579 = scalar_lea.vmem [#allocation3], 12
    %v580 = vld [vmem:[%s579] sm:$0x3]
    %v581 = vadd.f32 %v580, %v574
    %v582 = vtanh.pop %v578
    %v583 = vxor.u32 %v578, 2147483648
    %v584 = vmul.f32 %v583, 1.442695
    %v585 = vpow.pop %v584
    %v586 = vadd.f32 %v585, 1.0
    %v587 = vrcp.pop %v586
    %v588 = vmul.f32 1.0, %v587
    %v589 = vsel %vm355, %v582, %v588
    %v590 = vtanh.pop %v581
    %v591 = vxor.u32 %v581, 2147483648
    %v592 = vmul.f32 %v591, 1.442695
    %v593 = vpow.pop %v592
    %v594 = vadd.f32 %v593, 1.0
    %v595 = vrcp.pop %v594
    %v596 = vmul.f32 1.0, %v595
    %v597 = vsel %vm355, %v590, %v596
    %v598 = vmul.f32 %v589, %v462
    %600 = vrot.lane.b32.xlu0 %v589, 64
    %v601 = vpop.permute.xlu0 %600
    %v603 = vmul.f32 %v589, %v601
    %605 = vrot.lane.b32.xlu0 %v603, 32
    %v606 = vpop.permute.xlu0 %605
    %v608 = vadd.f32 %v598, %v606
    %v609 = vtanh.pop %v608
    %611 = vrot.lane.b32.xlu0 %v609, 64
    %v612 = vpop.permute.xlu0 %611
    %v614 = vmul.f32 %v589, %v612
    %v615 = vmul.f32 %v597, %v479
    %617 = vrot.lane.b32.xlu0 %v597, 64
    %v618 = vpop.permute.xlu0 %617
    %v620 = vmul.f32 %v597, %v618
    %622 = vrot.lane.b32.xlu0 %v620, 32
    %v623 = vpop.permute.xlu0 %622
    %v625 = vadd.f32 %v615, %v623
    %v626 = vtanh.pop %v625
    %628 = vrot.lane.b32.xlu0 %v626, 64
    %v629 = vpop.permute.xlu0 %628
    %v631 = vmul.f32 %v597, %v629
    %633 = vrot.lane.b32.xlu0 %v614, 32
    %v634 = vpop.permute.xlu0 %633
    %s636 = scalar_lea.vmem [#allocation4], 2
    %637 = vst.msk [vmem:[%s636] sm:$0x3] %vm490, %v634
    %639 = vrot.lane.b32.xlu0 %v631, 32
    %v640 = vpop.permute.xlu0 %639
    %s642 = scalar_lea.vmem [#allocation5], 12
    %643 = vst.msk [vmem:[%s642] sm:$0x3] %vm490, %v640
    %644 = vrot.lane.b32.xlu0 %v631, 64
    %v645 = vpop.permute.xlu0 %644
    %v647 = vsel %vm149, %v634, %v645
    %v649 = vsel %vm356, %v647, 0
    %651 = vmatprep.subr.mxu0 %v336
    %652 = vmatpush1.msra.mxu0 %v335
    %653 = vmatprep.subr.mxu0 %v338
    %654 = vmatpush1.msra.mxu0 %v337
    %655 = vmatprep.subr.mxu0 %v340
    %656 = vmatpush1.msra.mxu0 %v339
    %657 = vmatprep.subr.mxu0 %v342
    %658 = vmatpush1.msra.mxu0 %v341
    %659 = vmatprep.subr.mxu0 %v344
    %660 = vmatpush1.msra.mxu0 %v343
    %661 = vmatprep.subr.mxu0 %v346
    %662 = vmatpush1.msra.mxu0 %v345
    %663 = vmatprep.subr.mxu0 %v348
    %664 = vmatpush1.msra.mxu0 %v347
    %665 = vmatprep.subr.mxu0 %v350
    %666 = vmatpush1.msra.mxu0 %v349
    %667 = vmatprep.subr.mxu0 0.0
    %668 = vmatpush1.msra.mxu0 0.0
    %669 = vmatprep.subr.mxu0 0.0
    %670 = vmatpush1.msra.mxu0 0.0
    %671 = vmatprep.subr.mxu0 0.0
    %672 = vmatpush1.msra.mxu0 0.0
    %673 = vmatprep.subr.mxu0 0.0
    %674 = vmatpush1.msra.mxu0 0.0
    %675 = vmatprep.subr.mxu0 0.0
    %676 = vmatpush1.msra.mxu0 0.0
    %677 = vmatprep.subr.mxu0 0.0
    %678 = vmatpush1.msra.mxu0 0.0
    %679 = vmatprep.subr.mxu0 0.0
    %680 = vmatpush1.msra.mxu0 0.0
    %681 = vmatprep.subr.mxu0 0.0
    %682 = vmatpush1.msra.mxu0 0.0
    %683 = vmatprep.subr.mxu0 0.0
    %684 = vmatpush1.msra.mxu0 0.0
    %685 = vmatprep.subr.mxu0 0.0
    %686 = vmatpush1.msra.mxu0 0.0
    %687 = vmatprep.subr.mxu0 0.0
    %688 = vmatpush1.msra.mxu0 0.0
    %689 = vmatprep.subr.mxu0 0.0
    %690 = vmatpush1.msra.mxu0 0.0
    %691 = vmatprep.subr.mxu0 0.0
    %692 = vmatpush1.msra.mxu0 0.0
    %693 = vmatprep.subr.mxu0 0.0
    %694 = vmatpush1.msra.mxu0 0.0
    %695 = vmatprep.subr.mxu0 0.0
    %696 = vmatpush1.msra.mxu0 0.0
    %697 = vmatprep.subr.mxu0 0.0
    %698 = vmatpush1.msra.mxu0 0.0
    %699 = vmatprep.subr.mxu0 0.0
    %700 = vmatpush1.msra.mxu0 0.0
    %701 = vmatprep.subr.mxu0 0.0
    %702 = vmatpush1.msra.mxu0 0.0
    %703 = vmatprep.subr.mxu0 0.0
    %704 = vmatpush1.msra.mxu0 0.0
    %705 = vmatprep.subr.mxu0 0.0
    %706 = vmatpush1.msra.mxu0 0.0
    %707 = vmatprep.subr.mxu0 0.0
    %708 = vmatpush1.msra.mxu0 0.0
    %709 = vmatprep.subr.mxu0 0.0
    %710 = vmatpush1.msra.mxu0 0.0
    %711 = vmatprep.subr.mxu0 0.0
    %712 = vmatpush1.msra.mxu0 0.0
    %713 = vmatprep.subr.mxu0 0.0
    %714 = vmatpush1.msra.mxu0 0.0
    %715 = vmatprep.mubr.f32.mxu0 0.0
    %716 = vmatmul.mubr.f32.gmra.mrb[0].mxu0 %v649
    %v717 = vpop.f32.mrb[0].mxu0
    %v718 = vadd.f32 0.0, %v717
    %v719 = vpop.f32.mrb[0].mxu0
    %v720 = vadd.f32 0.0, %v719
    %721 = vdwg.mxu0
    %s722 = scalar_lea.vmem [#allocation2], 4
    %v723 = vld [vmem:[%s722] sm:$0x3]
    %v724 = vadd.f32 %v723, %v718
    %s725 = scalar_lea.vmem [#allocation3], 10
    %v726 = vld [vmem:[%s725] sm:$0x3]
    %v727 = vadd.f32 %v726, %v720
    %v728 = vtanh.pop %v724
    %v729 = vxor.u32 %v724, 2147483648
    %v730 = vmul.f32 %v729, 1.442695
    %v731 = vpow.pop %v730
    %v732 = vadd.f32 %v731, 1.0
    %v733 = vrcp.pop %v732
    %v734 = vmul.f32 1.0, %v733
    %v735 = vsel %vm355, %v728, %v734
    %v736 = vtanh.pop %v727
    %v737 = vxor.u32 %v727, 2147483648
    %v738 = vmul.f32 %v737, 1.442695
    %v739 = vpow.pop %v738
    %v740 = vadd.f32 %v739, 1.0
    %v741 = vrcp.pop %v740
    %v742 = vmul.f32 1.0, %v741
    %v743 = vsel %vm355, %v736, %v742
    %v744 = vmul.f32 %v735, %v608
    %746 = vrot.lane.b32.xlu0 %v735, 64
    %v747 = vpop.permute.xlu0 %746
    %v749 = vmul.f32 %v735, %v747
    %751 = vrot.lane.b32.xlu0 %v749, 32
    %v752 = vpop.permute.xlu0 %751
    %v754 = vadd.f32 %v744, %v752
    %v755 = vtanh.pop %v754
    %757 = vrot.lane.b32.xlu0 %v755, 64
    %v758 = vpop.permute.xlu0 %757
    %v760 = vmul.f32 %v735, %v758
    %v761 = vmul.f32 %v743, %v625
    %763 = vrot.lane.b32.xlu0 %v743, 64
    %v764 = vpop.permute.xlu0 %763
    %v766 = vmul.f32 %v743, %v764
    %768 = vrot.lane.b32.xlu0 %v766, 32
    %v769 = vpop.permute.xlu0 %768
    %v771 = vadd.f32 %v761, %v769
    %v772 = vtanh.pop %v771
    %774 = vrot.lane.b32.xlu0 %v772, 64
    %v775 = vpop.permute.xlu0 %774
    %v777 = vmul.f32 %v743, %v775
    %779 = vrot.lane.b32.xlu0 %v760, 32
    %v780 = vpop.permute.xlu0 %779
    %s782 = scalar_lea.vmem [#allocation4], 4
    %783 = vst.msk [vmem:[%s782] sm:$0x3] %vm490, %v780
    %785 = vrot.lane.b32.xlu0 %v777, 32
    %v786 = vpop.permute.xlu0 %785
    %s788 = scalar_lea.vmem [#allocation5], 10
    %789 = vst.msk [vmem:[%s788] sm:$0x3] %vm490, %v786
    %790 = vrot.lane.b32.xlu0 %v777, 64
    %v791 = vpop.permute.xlu0 %790
    %v793 = vsel %vm149, %v780, %v791
    %v795 = vsel %vm356, %v793, 0
    %797 = vmatprep.subr.mxu0 %v336
    %798 = vmatpush1.msra.mxu0 %v335
    %799 = vmatprep.subr.mxu0 %v338
    %800 = vmatpush1.msra.mxu0 %v337
    %801 = vmatprep.subr.mxu0 %v340
    %802 = vmatpush1.msra.mxu0 %v339
    %803 = vmatprep.subr.mxu0 %v342
    %804 = vmatpush1.msra.mxu0 %v341
    %805 = vmatprep.subr.mxu0 %v344
    %806 = vmatpush1.msra.mxu0 %v343
    %807 = vmatprep.subr.mxu0 %v346
    %808 = vmatpush1.msra.mxu0 %v345
    %809 = vmatprep.subr.mxu0 %v348
    %810 = vmatpush1.msra.mxu0 %v347
    %811 = vmatprep.subr.mxu0 %v350
    %812 = vmatpush1.msra.mxu0 %v349
    %813 = vmatprep.subr.mxu0 0.0
    %814 = vmatpush1.msra.mxu0 0.0
    %815 = vmatprep.subr.mxu0 0.0
    %816 = vmatpush1.msra.mxu0 0.0
    %817 = vmatprep.subr.mxu0 0.0
    %818 = vmatpush1.msra.mxu0 0.0
    %819 = vmatprep.subr.mxu0 0.0
    %820 = vmatpush1.msra.mxu0 0.0
    %821 = vmatprep.subr.mxu0 0.0
    %822 = vmatpush1.msra.mxu0 0.0
    %823 = vmatprep.subr.mxu0 0.0
    %824 = vmatpush1.msra.mxu0 0.0
    %825 = vmatprep.subr.mxu0 0.0
    %826 = vmatpush1.msra.mxu0 0.0
    %827 = vmatprep.subr.mxu0 0.0
    %828 = vmatpush1.msra.mxu0 0.0
    %829 = vmatprep.subr.mxu0 0.0
    %830 = vmatpush1.msra.mxu0 0.0
    %831 = vmatprep.subr.mxu0 0.0
    %832 = vmatpush1.msra.mxu0 0.0
    %833 = vmatprep.subr.mxu0 0.0
    %834 = vmatpush1.msra.mxu0 0.0
    %835 = vmatprep.subr.mxu0 0.0
    %836 = vmatpush1.msra.mxu0 0.0
    %837 = vmatprep.subr.mxu0 0.0
    %838 = vmatpush1.msra.mxu0 0.0
    %839 = vmatprep.subr.mxu0 0.0
    %840 = vmatpush1.msra.mxu0 0.0
    %841 = vmatprep.subr.mxu0 0.0
    %842 = vmatpush1.msra.mxu0 0.0
    %843 = vmatprep.subr.mxu0 0.0
    %844 = vmatpush1.msra.mxu0 0.0
    %845 = vmatprep.subr.mxu0 0.0
    %846 = vmatpush1.msra.mxu0 0.0
    %847 = vmatprep.subr.mxu0 0.0
    %848 = vmatpush1.msra.mxu0 0.0
    %849 = vmatprep.subr.mxu0 0.0
    %850 = vmatpush1.msra.mxu0 0.0
    %851 = vmatprep.subr.mxu0 0.0
    %852 = vmatpush1.msra.mxu0 0.0
    %853 = vmatprep.subr.mxu0 0.0
    %854 = vmatpush1.msra.mxu0 0.0
    %855 = vmatprep.subr.mxu0 0.0
    %856 = vmatpush1.msra.mxu0 0.0
    %857 = vmatprep.subr.mxu0 0.0
    %858 = vmatpush1.msra.mxu0 0.0
    %859 = vmatprep.subr.mxu0 0.0
    %860 = vmatpush1.msra.mxu0 0.0
    %861 = vmatprep.mubr.f32.mxu0 0.0
    %862 = vmatmul.mubr.f32.gmra.mrb[0].mxu0 %v795
    %v863 = vpop.f32.mrb[0].mxu0
    %v864 = vadd.f32 0.0, %v863
    %v865 = vpop.f32.mrb[0].mxu0
    %v866 = vadd.f32 0.0, %v865
    %867 = vdwg.mxu0
    %s868 = scalar_lea.vmem [#allocation2], 6
    %v869 = vld [vmem:[%s868] sm:$0x3]
    %v870 = vadd.f32 %v869, %v864
    %s871 = scalar_lea.vmem [#allocation3], 8
    %v872 = vld [vmem:[%s871] sm:$0x3]
    %v873 = vadd.f32 %v872, %v866
    %v874 = vtanh.pop %v870
    %v875 = vxor.u32 %v870, 2147483648
    %v876 = vmul.f32 %v875, 1.442695
    %v877 = vpow.pop %v876
    %v878 = vadd.f32 %v877, 1.0
    %v879 = vrcp.pop %v878
    %v880 = vmul.f32 1.0, %v879
    %v881 = vsel %vm355, %v874, %v880
    %v882 = vtanh.pop %v873
    %v883 = vxor.u32 %v873, 2147483648
    %v884 = vmul.f32 %v883, 1.442695
    %v885 = vpow.pop %v884
    %v886 = vadd.f32 %v885, 1.0
    %v887 = vrcp.pop %v886
    %v888 = vmul.f32 1.0, %v887
    %v889 = vsel %vm355, %v882, %v888
    %v890 = vmul.f32 %v881, %v754
    %892 = vrot.lane.b32.xlu0 %v881, 64
    %v893 = vpop.permute.xlu0 %892
    %v895 = vmul.f32 %v881, %v893
    %897 = vrot.lane.b32.xlu0 %v895, 32
    %v898 = vpop.permute.xlu0 %897
    %v900 = vadd.f32 %v890, %v898
    %v901 = vtanh.pop %v900
    %903 = vrot.lane.b32.xlu0 %v901, 64
    %v904 = vpop.permute.xlu0 %903
    %v906 = vmul.f32 %v881, %v904
    %v907 = vmul.f32 %v889, %v771
    %909 = vrot.lane.b32.xlu0 %v889, 64
    %v910 = vpop.permute.xlu0 %909
    %v912 = vmul.f32 %v889, %v910
    %914 = vrot.lane.b32.xlu0 %v912, 32
    %v915 = vpop.permute.xlu0 %914
    %v917 = vadd.f32 %v907, %v915
    %v918 = vtanh.pop %v917
    %920 = vrot.lane.b32.xlu0 %v918, 64
    %v921 = vpop.permute.xlu0 %920
    %v923 = vmul.f32 %v889, %v921
    %925 = vrot.lane.b32.xlu0 %v906, 32
    %v926 = vpop.permute.xlu0 %925
    %s928 = scalar_lea.vmem [#allocation4], 6
    %929 = vst.msk [vmem:[%s928] sm:$0x3] %vm490, %v926
    %931 = vrot.lane.b32.xlu0 %v923, 32
    %v932 = vpop.permute.xlu0 %931
    %s934 = scalar_lea.vmem [#allocation5], 8
    %935 = vst.msk [vmem:[%s934] sm:$0x3] %vm490, %v932
    %936 = vrot.lane.b32.xlu0 %v923, 64
    %v937 = vpop.permute.xlu0 %936
    %v939 = vsel %vm149, %v926, %v937
    %v941 = vsel %vm356, %v939, 0
    %943 = vmatprep.subr.mxu0 %v336
    %944 = vmatpush1.msra.mxu0 %v335
    %945 = vmatprep.subr.mxu0 %v338
    %946 = vmatpush1.msra.mxu0 %v337
    %947 = vmatprep.subr.mxu0 %v340
    %948 = vmatpush1.msra.mxu0 %v339
    %949 = vmatprep.subr.mxu0 %v342
    %950 = vmatpush1.msra.mxu0 %v341
    %951 = vmatprep.subr.mxu0 %v344
    %952 = vmatpush1.msra.mxu0 %v343
    %953 = vmatprep.subr.mxu0 %v346
    %954 = vmatpush1.msra.mxu0 %v345
    %955 = vmatprep.subr.mxu0 %v348
    %956 = vmatpush1.msra.mxu0 %v347
    %957 = vmatprep.subr.mxu0 %v350
    %958 = vmatpush1.msra.mxu0 %v349
    %959 = vmatprep.subr.mxu0 0.0
    %960 = vmatpush1.msra.mxu0 0.0
    %961 = vmatprep.subr.mxu0 0.0
    %962 = vmatpush1.msra.mxu0 0.0
    %963 = vmatprep.subr.mxu0 0.0
    %964 = vmatpush1.msra.mxu0 0.0
    %965 = vmatprep.subr.mxu0 0.0
    %966 = vmatpush1.msra.mxu0 0.0
    %967 = vmatprep.subr.mxu0 0.0
    %968 = vmatpush1.msra.mxu0 0.0
    %969 = vmatprep.subr.mxu0 0.0
    %970 = vmatpush1.msra.mxu0 0.0
    %971 = vmatprep.subr.mxu0 0.0
    %972 = vmatpush1.msra.mxu0 0.0
    %973 = vmatprep.subr.mxu0 0.0
    %974 = vmatpush1.msra.mxu0 0.0
    %975 = vmatprep.subr.mxu0 0.0
    %976 = vmatpush1.msra.mxu0 0.0
    %977 = vmatprep.subr.mxu0 0.0
    %978 = vmatpush1.msra.mxu0 0.0
    %979 = vmatprep.subr.mxu0 0.0
    %980 = vmatpush1.msra.mxu0 0.0
    %981 = vmatprep.subr.mxu0 0.0
    %982 = vmatpush1.msra.mxu0 0.0
    %983 = vmatprep.subr.mxu0 0.0
    %984 = vmatpush1.msra.mxu0 0.0
    %985 = vmatprep.subr.mxu0 0.0
    %986 = vmatpush1.msra.mxu0 0.0
    %987 = vmatprep.subr.mxu0 0.0
    %988 = vmatpush1.msra.mxu0 0.0
    %989 = vmatprep.subr.mxu0 0.0
    %990 = vmatpush1.msra.mxu0 0.0
    %991 = vmatprep.subr.mxu0 0.0
    %992 = vmatpush1.msra.mxu0 0.0
    %993 = vmatprep.subr.mxu0 0.0
    %994 = vmatpush1.msra.mxu0 0.0
    %995 = vmatprep.subr.mxu0 0.0
    %996 = vmatpush1.msra.mxu0 0.0
    %997 = vmatprep.subr.mxu0 0.0
    %998 = vmatpush1.msra.mxu0 0.0
    %999 = vmatprep.subr.mxu0 0.0
    %1000 = vmatpush1.msra.mxu0 0.0
    %1001 = vmatprep.subr.mxu0 0.0
    %1002 = vmatpush1.msra.mxu0 0.0
    %1003 = vmatprep.subr.mxu0 0.0
    %1004 = vmatpush1.msra.mxu0 0.0
    %1005 = vmatprep.subr.mxu0 0.0
    %1006 = vmatpush1.msra.mxu0 0.0
    %1007 = vmatprep.mubr.f32.mxu0 0.0
    %1008 = vmatmul.mubr.f32.gmra.mrb[0].mxu0 %v941
    %v1009 = vpop.f32.mrb[0].mxu0
    %v1010 = vadd.f32 0.0, %v1009
    %v1011 = vpop.f32.mrb[0].mxu0
    %v1012 = vadd.f32 0.0, %v1011
    %1013 = vdwg.mxu0
    %s1014 = scalar_lea.vmem [#allocation2], 8
    %v1015 = vld [vmem:[%s1014] sm:$0x3]
    %v1016 = vadd.f32 %v1015, %v1010
    %s1017 = scalar_lea.vmem [#allocation3], 6
    %v1018 = vld [vmem:[%s1017] sm:$0x3]
    %v1019 = vadd.f32 %v1018, %v1012
    %v1020 = vtanh.pop %v1016
    %v1021 = vxor.u32 %v1016, 2147483648
    %v1022 = vmul.f32 %v1021, 1.442695
    %v1023 = vpow.pop %v1022
    %v1024 = vadd.f32 %v1023, 1.0
    %v1025 = vrcp.pop %v1024
    %v1026 = vmul.f32 1.0, %v1025
    %v1027 = vsel %vm355, %v1020, %v1026
    %v1028 = vtanh.pop %v1019
    %v1029 = vxor.u32 %v1019, 2147483648
    %v1030 = vmul.f32 %v1029, 1.442695
    %v1031 = vpow.pop %v1030
    %v1032 = vadd.f32 %v1031, 1.0
    %v1033 = vrcp.pop %v1032
    %v1034 = vmul.f32 1.0, %v1033
    %v1035 = vsel %vm355, %v1028, %v1034
    %v1036 = vmul.f32 %v1027, %v900
    %1038 = vrot.lane.b32.xlu0 %v1027, 64
    %v1039 = vpop.permute.xlu0 %1038
    %v1041 = vmul.f32 %v1027, %v1039
    %1043 = vrot.lane.b32.xlu0 %v1041, 32
    %v1044 = vpop.permute.xlu0 %1043
    %v1046 = vadd.f32 %v1036, %v1044
    %v1047 = vtanh.pop %v1046
    %1049 = vrot.lane.b32.xlu0 %v1047, 64
    %v1050 = vpop.permute.xlu0 %1049
    %v1052 = vmul.f32 %v1027, %v1050
    %v1053 = vmul.f32 %v1035, %v917
    %1055 = vrot.lane.b32.xlu0 %v1035, 64
    %v1056 = vpop.permute.xlu0 %1055
    %v1058 = vmul.f32 %v1035, %v1056
    %1060 = vrot.lane.b32.xlu0 %v1058, 32
    %v1061 = vpop.permute.xlu0 %1060
    %v1063 = vadd.f32 %v1053, %v1061
    %v1064 = vtanh.pop %v1063
    %1066 = vrot.lane.b32.xlu0 %v1064, 64
    %v1067 = vpop.permute.xlu0 %1066
    %v1069 = vmul.f32 %v1035, %v1067
    %1071 = vrot.lane.b32.xlu0 %v1052, 32
    %v1072 = vpop.permute.xlu0 %1071
    %s1074 = scalar_lea.vmem [#allocation4], 8
    %1075 = vst.msk [vmem:[%s1074] sm:$0x3] %vm490, %v1072
    %1077 = vrot.lane.b32.xlu0 %v1069, 32
    %v1078 = vpop.permute.xlu0 %1077
    %s1080 = scalar_lea.vmem [#allocation5], 6
    %1081 = vst.msk [vmem:[%s1080] sm:$0x3] %vm490, %v1078
    %1082 = vrot.lane.b32.xlu0 %v1069, 64
    %v1083 = vpop.permute.xlu0 %1082
    %v1085 = vsel %vm149, %v1072, %v1083
    %v1087 = vsel %vm356, %v1085, 0
    %1089 = vmatprep.subr.mxu0 %v336
    %1090 = vmatpush1.msra.mxu0 %v335
    %1091 = vmatprep.subr.mxu0 %v338
    %1092 = vmatpush1.msra.mxu0 %v337
    %1093 = vmatprep.subr.mxu0 %v340
    %1094 = vmatpush1.msra.mxu0 %v339
    %1095 = vmatprep.subr.mxu0 %v342
    %1096 = vmatpush1.msra.mxu0 %v341
    %1097 = vmatprep.subr.mxu0 %v344
    %1098 = vmatpush1.msra.mxu0 %v343
    %1099 = vmatprep.subr.mxu0 %v346
    %1100 = vmatpush1.msra.mxu0 %v345
    %1101 = vmatprep.subr.mxu0 %v348
    %1102 = vmatpush1.msra.mxu0 %v347
    %1103 = vmatprep.subr.mxu0 %v350
    %1104 = vmatpush1.msra.mxu0 %v349
    %1105 = vmatprep.subr.mxu0 0.0
    %1106 = vmatpush1.msra.mxu0 0.0
    %1107 = vmatprep.subr.mxu0 0.0
    %1108 = vmatpush1.msra.mxu0 0.0
    %1109 = vmatprep.subr.mxu0 0.0
    %1110 = vmatpush1.msra.mxu0 0.0
    %1111 = vmatprep.subr.mxu0 0.0
    %1112 = vmatpush1.msra.mxu0 0.0
    %1113 = vmatprep.subr.mxu0 0.0
    %1114 = vmatpush1.msra.mxu0 0.0
    %1115 = vmatprep.subr.mxu0 0.0
    %1116 = vmatpush1.msra.mxu0 0.0
    %1117 = vmatprep.subr.mxu0 0.0
    %1118 = vmatpush1.msra.mxu0 0.0
    %1119 = vmatprep.subr.mxu0 0.0
    %1120 = vmatpush1.msra.mxu0 0.0
    %1121 = vmatprep.subr.mxu0 0.0
    %1122 = vmatpush1.msra.mxu0 0.0
    %1123 = vmatprep.subr.mxu0 0.0
    %1124 = vmatpush1.msra.mxu0 0.0
    %1125 = vmatprep.subr.mxu0 0.0
    %1126 = vmatpush1.msra.mxu0 0.0
    %1127 = vmatprep.subr.mxu0 0.0
    %1128 = vmatpush1.msra.mxu0 0.0
    %1129 = vmatprep.subr.mxu0 0.0
    %1130 = vmatpush1.msra.mxu0 0.0
    %1131 = vmatprep.subr.mxu0 0.0
    %1132 = vmatpush1.msra.mxu0 0.0
    %1133 = vmatprep.subr.mxu0 0.0
    %1134 = vmatpush1.msra.mxu0 0.0
    %1135 = vmatprep.subr.mxu0 0.0
    %1136 = vmatpush1.msra.mxu0 0.0
    %1137 = vmatprep.subr.mxu0 0.0
    %1138 = vmatpush1.msra.mxu0 0.0
    %1139 = vmatprep.subr.mxu0 0.0
    %1140 = vmatpush1.msra.mxu0 0.0
    %1141 = vmatprep.subr.mxu0 0.0
    %1142 = vmatpush1.msra.mxu0 0.0
    %1143 = vmatprep.subr.mxu0 0.0
    %1144 = vmatpush1.msra.mxu0 0.0
    %1145 = vmatprep.subr.mxu0 0.0
    %1146 = vmatpush1.msra.mxu0 0.0
    %1147 = vmatprep.subr.mxu0 0.0
    %1148 = vmatpush1.msra.mxu0 0.0
    %1149 = vmatprep.subr.mxu0 0.0
    %1150 = vmatpush1.msra.mxu0 0.0
    %1151 = vmatprep.subr.mxu0 0.0
    %1152 = vmatpush1.msra.mxu0 0.0
    %1153 = vmatprep.mubr.f32.mxu0 0.0
    %1154 = vmatmul.mubr.f32.gmra.mrb[0].mxu0 %v1087
    %v1155 = vpop.f32.mrb[0].mxu0
    %v1156 = vadd.f32 0.0, %v1155
    %v1157 = vpop.f32.mrb[0].mxu0
    %v1158 = vadd.f32 0.0, %v1157
    %1159 = vdwg.mxu0
    %s1160 = scalar_lea.vmem [#allocation2], 10
    %v1161 = vld [vmem:[%s1160] sm:$0x3]
    %v1162 = vadd.f32 %v1161, %v1156
    %s1163 = scalar_lea.vmem [#allocation3], 4
    %v1164 = vld [vmem:[%s1163] sm:$0x3]
    %v1165 = vadd.f32 %v1164, %v1158
    %v1166 = vtanh.pop %v1162
    %v1167 = vxor.u32 %v1162, 2147483648
    %v1168 = vmul.f32 %v1167, 1.442695
    %v1169 = vpow.pop %v1168
    %v1170 = vadd.f32 %v1169, 1.0
    %v1171 = vrcp.pop %v1170
    %v1172 = vmul.f32 1.0, %v1171
    %v1173 = vsel %vm355, %v1166, %v1172
    %v1174 = vtanh.pop %v1165
    %v1175 = vxor.u32 %v1165, 2147483648
    %v1176 = vmul.f32 %v1175, 1.442695
    %v1177 = vpow.pop %v1176
    %v1178 = vadd.f32 %v1177, 1.0
    %v1179 = vrcp.pop %v1178
    %v1180 = vmul.f32 1.0, %v1179
    %v1181 = vsel %vm355, %v1174, %v1180
    %v1182 = vmul.f32 %v1173, %v1046
    %1184 = vrot.lane.b32.xlu0 %v1173, 64
    %v1185 = vpop.permute.xlu0 %1184
    %v1187 = vmul.f32 %v1173, %v1185
    %1189 = vrot.lane.b32.xlu0 %v1187, 32
    %v1190 = vpop.permute.xlu0 %1189
    %v1192 = vadd.f32 %v1182, %v1190
    %v1193 = vtanh.pop %v1192
    %1195 = vrot.lane.b32.xlu0 %v1193, 64
    %v1196 = vpop.permute.xlu0 %1195
    %v1198 = vmul.f32 %v1173, %v1196
    %v1199 = vmul.f32 %v1181, %v1063
    %1201 = vrot.lane.b32.xlu0 %v1181, 64
    %v1202 = vpop.permute.xlu0 %1201
    %v1204 = vmul.f32 %v1181, %v1202
    %1206 = vrot.lane.b32.xlu0 %v1204, 32
    %v1207 = vpop.permute.xlu0 %1206
    %v1209 = vadd.f32 %v1199, %v1207
    %v1210 = vtanh.pop %v1209
    %1212 = vrot.lane.b32.xlu0 %v1210, 64
    %v1213 = vpop.permute.xlu0 %1212
    %v1215 = vmul.f32 %v1181, %v1213
    %1217 = vrot.lane.b32.xlu0 %v1198, 32
    %v1218 = vpop.permute.xlu0 %1217
    %s1220 = scalar_lea.vmem [#allocation4], 10
    %1221 = vst.msk [vmem:[%s1220] sm:$0x3] %vm490, %v1218
    %1223 = vrot.lane.b32.xlu0 %v1215, 32
    %v1224 = vpop.permute.xlu0 %1223
    %s1226 = scalar_lea.vmem [#allocation5], 4
    %1227 = vst.msk [vmem:[%s1226] sm:$0x3] %vm490, %v1224
    %1228 = vrot.lane.b32.xlu0 %v1215, 64
    %v1229 = vpop.permute.xlu0 %1228
    %v1231 = vsel %vm149, %v1218, %v1229
    %v1233 = vsel %vm356, %v1231, 0
    %1235 = vmatprep.subr.mxu0 %v336
    %1236 = vmatpush1.msra.mxu0 %v335
    %1237 = vmatprep.subr.mxu0 %v338
    %1238 = vmatpush1.msra.mxu0 %v337
    %1239 = vmatprep.subr.mxu0 %v340
    %1240 = vmatpush1.msra.mxu0 %v339
    %1241 = vmatprep.subr.mxu0 %v342
    %1242 = vmatpush1.msra.mxu0 %v341
    %1243 = vmatprep.subr.mxu0 %v344
    %1244 = vmatpush1.msra.mxu0 %v343
    %1245 = vmatprep.subr.mxu0 %v346
    %1246 = vmatpush1.msra.mxu0 %v345
    %1247 = vmatprep.subr.mxu0 %v348
    %1248 = vmatpush1.msra.mxu0 %v347
    %1249 = vmatprep.subr.mxu0 %v350
    %1250 = vmatpush1.msra.mxu0 %v349
    %1251 = vmatprep.subr.mxu0 0.0
    %1252 = vmatpush1.msra.mxu0 0.0
    %1253 = vmatprep.subr.mxu0 0.0
    %1254 = vmatpush1.msra.mxu0 0.0
    %1255 = vmatprep.subr.mxu0 0.0
    %1256 = vmatpush1.msra.mxu0 0.0
    %1257 = vmatprep.subr.mxu0 0.0
    %1258 = vmatpush1.msra.mxu0 0.0
    %1259 = vmatprep.subr.mxu0 0.0
    %1260 = vmatpush1.msra.mxu0 0.0
    %1261 = vmatprep.subr.mxu0 0.0
    %1262 = vmatpush1.msra.mxu0 0.0
    %1263 = vmatprep.subr.mxu0 0.0
    %1264 = vmatpush1.msra.mxu0 0.0
    %1265 = vmatprep.subr.mxu0 0.0
    %1266 = vmatpush1.msra.mxu0 0.0
    %1267 = vmatprep.subr.mxu0 0.0
    %1268 = vmatpush1.msra.mxu0 0.0
    %1269 = vmatprep.subr.mxu0 0.0
    %1270 = vmatpush1.msra.mxu0 0.0
    %1271 = vmatprep.subr.mxu0 0.0
    %1272 = vmatpush1.msra.mxu0 0.0
    %1273 = vmatprep.subr.mxu0 0.0
    %1274 = vmatpush1.msra.mxu0 0.0
    %1275 = vmatprep.subr.mxu0 0.0
    %1276 = vmatpush1.msra.mxu0 0.0
    %1277 = vmatprep.subr.mxu0 0.0
    %1278 = vmatpush1.msra.mxu0 0.0
    %1279 = vmatprep.subr.mxu0 0.0
    %1280 = vmatpush1.msra.mxu0 0.0
    %1281 = vmatprep.subr.mxu0 0.0
    %1282 = vmatpush1.msra.mxu0 0.0
    %1283 = vmatprep.subr.mxu0 0.0
    %1284 = vmatpush1.msra.mxu0 0.0
    %1285 = vmatprep.subr.mxu0 0.0
    %1286 = vmatpush1.msra.mxu0 0.0
    %1287 = vmatprep.subr.mxu0 0.0
    %1288 = vmatpush1.msra.mxu0 0.0
    %1289 = vmatprep.subr.mxu0 0.0
    %1290 = vmatpush1.msra.mxu0 0.0
    %1291 = vmatprep.subr.mxu0 0.0
    %1292 = vmatpush1.msra.mxu0 0.0
    %1293 = vmatprep.subr.mxu0 0.0
    %1294 = vmatpush1.msra.mxu0 0.0
    %1295 = vmatprep.subr.mxu0 0.0
    %1296 = vmatpush1.msra.mxu0 0.0
    %1297 = vmatprep.subr.mxu0 0.0
    %1298 = vmatpush1.msra.mxu0 0.0
    %1299 = vmatprep.mubr.f32.mxu0 0.0
    %1300 = vmatmul.mubr.f32.gmra.mrb[0].mxu0 %v1233
    %v1301 = vpop.f32.mrb[0].mxu0
    %v1302 = vadd.f32 0.0, %v1301
    %v1303 = vpop.f32.mrb[0].mxu0
    %v1304 = vadd.f32 0.0, %v1303
    %1305 = vdwg.mxu0
    %s1306 = scalar_lea.vmem [#allocation2], 12
    %v1307 = vld [vmem:[%s1306] sm:$0x3]
    %v1308 = vadd.f32 %v1307, %v1302
    %s1309 = scalar_lea.vmem [#allocation3], 2
    %v1310 = vld [vmem:[%s1309] sm:$0x3]
    %v1311 = vadd.f32 %v1310, %v1304
    %v1312 = vtanh.pop %v1308
    %v1313 = vxor.u32 %v1308, 2147483648
    %v1314 = vmul.f32 %v1313, 1.442695
    %v1315 = vpow.pop %v1314
    %v1316 = vadd.f32 %v1315, 1.0
    %v1317 = vrcp.pop %v1316
    %v1318 = vmul.f32 1.0, %v1317
    %v1319 = vsel %vm355, %v1312, %v1318
    %v1320 = vtanh.pop %v1311
    %v1321 = vxor.u32 %v1311, 2147483648
    %v1322 = vmul.f32 %v1321, 1.442695
    %v1323 = vpow.pop %v1322
    %v1324 = vadd.f32 %v1323, 1.0
    %v1325 = vrcp.pop %v1324
    %v1326 = vmul.f32 1.0, %v1325
    %v1327 = vsel %vm355, %v1320, %v1326
    %v1328 = vmul.f32 %v1319, %v1192
    %1330 = vrot.lane.b32.xlu0 %v1319, 64
    %v1331 = vpop.permute.xlu0 %1330
    %v1333 = vmul.f32 %v1319, %v1331
    %1335 = vrot.lane.b32.xlu0 %v1333, 32
    %v1336 = vpop.permute.xlu0 %1335
    %v1338 = vadd.f32 %v1328, %v1336
    %v1339 = vtanh.pop %v1338
    %1341 = vrot.lane.b32.xlu0 %v1339, 64
    %v1342 = vpop.permute.xlu0 %1341
    %v1344 = vmul.f32 %v1319, %v1342
    %v1345 = vmul.f32 %v1327, %v1209
    %1347 = vrot.lane.b32.xlu0 %v1327, 64
    %v1348 = vpop.permute.xlu0 %1347
    %v1350 = vmul.f32 %v1327, %v1348
    %1352 = vrot.lane.b32.xlu0 %v1350, 32
    %v1353 = vpop.permute.xlu0 %1352
    %v1355 = vadd.f32 %v1345, %v1353
    %v1356 = vtanh.pop %v1355
    %1358 = vrot.lane.b32.xlu0 %v1356, 64
    %v1359 = vpop.permute.xlu0 %1358
    %v1361 = vmul.f32 %v1327, %v1359
    %1363 = vrot.lane.b32.xlu0 %v1344, 32
    %v1364 = vpop.permute.xlu0 %1363
    %s1366 = scalar_lea.vmem [#allocation4], 12
    %1367 = vst.msk [vmem:[%s1366] sm:$0x3] %vm490, %v1364
    %1369 = vrot.lane.b32.xlu0 %v1361, 32
    %v1370 = vpop.permute.xlu0 %1369
    %s1372 = scalar_lea.vmem [#allocation5], 2
    %1373 = vst.msk [vmem:[%s1372] sm:$0x3] %vm490, %v1370
    %1374 = vrot.lane.b32.xlu0 %v1361, 64
    %v1375 = vpop.permute.xlu0 %1374
    %v1377 = vsel %vm149, %v1364, %v1375
    %v1379 = vsel %vm356, %v1377, 0
    %1381 = vmatprep.subr.mxu0 %v336
    %1382 = vmatpush1.msra.mxu0 %v335
    %1383 = vmatprep.subr.mxu0 %v338
    %1384 = vmatpush1.msra.mxu0 %v337
    %1385 = vmatprep.subr.mxu0 %v340
    %1386 = vmatpush1.msra.mxu0 %v339
    %1387 = vmatprep.subr.mxu0 %v342
    %1388 = vmatpush1.msra.mxu0 %v341
    %1389 = vmatprep.subr.mxu0 %v344
    %1390 = vmatpush1.msra.mxu0 %v343
    %1391 = vmatprep.subr.mxu0 %v346
    %1392 = vmatpush1.msra.mxu0 %v345
    %1393 = vmatprep.subr.mxu0 %v348
    %1394 = vmatpush1.msra.mxu0 %v347
    %1395 = vmatprep.subr.mxu0 %v350
    %1396 = vmatpush1.msra.mxu0 %v349
    %1397 = vmatprep.subr.mxu0 0.0
    %1398 = vmatpush1.msra.mxu0 0.0
    %1399 = vmatprep.subr.mxu0 0.0
    %1400 = vmatpush1.msra.mxu0 0.0
    %1401 = vmatprep.subr.mxu0 0.0
    %1402 = vmatpush1.msra.mxu0 0.0
    %1403 = vmatprep.subr.mxu0 0.0
    %1404 = vmatpush1.msra.mxu0 0.0
    %1405 = vmatprep.subr.mxu0 0.0
    %1406 = vmatpush1.msra.mxu0 0.0
    %1407 = vmatprep.subr.mxu0 0.0
    %1408 = vmatpush1.msra.mxu0 0.0
    %1409 = vmatprep.subr.mxu0 0.0
    %1410 = vmatpush1.msra.mxu0 0.0
    %1411 = vmatprep.subr.mxu0 0.0
    %1412 = vmatpush1.msra.mxu0 0.0
    %1413 = vmatprep.subr.mxu0 0.0
    %1414 = vmatpush1.msra.mxu0 0.0
    %1415 = vmatprep.subr.mxu0 0.0
    %1416 = vmatpush1.msra.mxu0 0.0
    %1417 = vmatprep.subr.mxu0 0.0
    %1418 = vmatpush1.msra.mxu0 0.0
    %1419 = vmatprep.subr.mxu0 0.0
    %1420 = vmatpush1.msra.mxu0 0.0
    %1421 = vmatprep.subr.mxu0 0.0
    %1422 = vmatpush1.msra.mxu0 0.0
    %1423 = vmatprep.subr.mxu0 0.0
    %1424 = vmatpush1.msra.mxu0 0.0
    %1425 = vmatprep.subr.mxu0 0.0
    %1426 = vmatpush1.msra.mxu0 0.0
    %1427 = vmatprep.subr.mxu0 0.0
    %1428 = vmatpush1.msra.mxu0 0.0
    %1429 = vmatprep.subr.mxu0 0.0
    %1430 = vmatpush1.msra.mxu0 0.0
    %1431 = vmatprep.subr.mxu0 0.0
    %1432 = vmatpush1.msra.mxu0 0.0
    %1433 = vmatprep.subr.mxu0 0.0
    %1434 = vmatpush1.msra.mxu0 0.0
    %1435 = vmatprep.subr.mxu0 0.0
    %1436 = vmatpush1.msra.mxu0 0.0
    %1437 = vmatprep.subr.mxu0 0.0
    %1438 = vmatpush1.msra.mxu0 0.0
    %1439 = vmatprep.subr.mxu0 0.0
    %1440 = vmatpush1.msra.mxu0 0.0
    %1441 = vmatprep.subr.mxu0 0.0
    %1442 = vmatpush1.msra.mxu0 0.0
    %1443 = vmatprep.subr.mxu0 0.0
    %1444 = vmatpush1.msra.mxu0 0.0
    %1445 = vmatprep.mubr.f32.mxu0 0.0
    %1446 = vmatmul.mubr.f32.gmra.mrb[0].mxu0 %v1379
    %v1447 = vpop.f32.mrb[0].mxu0
    %v1448 = vadd.f32 0.0, %v1447
    %v1449 = vpop.f32.mrb[0].mxu0
    %v1450 = vadd.f32 0.0, %v1449
    %1451 = vdwg.mxu0
    %s1452 = scalar_lea.vmem [#allocation2], 14
    %v1453 = vld [vmem:[%s1452] sm:$0x3]
    %v1454 = vadd.f32 %v1453, %v1448
    %v1455 = vld [vmem:[#allocation3] sm:$0x3]
    %v1456 = vadd.f32 %v1455, %v1450
    %v1457 = vtanh.pop %v1454
    %v1458 = vxor.u32 %v1454, 2147483648
    %v1459 = vmul.f32 %v1458, 1.442695
    %v1460 = vpow.pop %v1459
    %v1461 = vadd.f32 %v1460, 1.0
    %v1462 = vrcp.pop %v1461
    %v1463 = vmul.f32 1.0, %v1462
    %v1464 = vsel %vm355, %v1457, %v1463
    %v1465 = vtanh.pop %v1456
    %v1466 = vxor.u32 %v1456, 2147483648
    %v1467 = vmul.f32 %v1466, 1.442695
    %v1468 = vpow.pop %v1467
    %v1469 = vadd.f32 %v1468, 1.0
    %v1470 = vrcp.pop %v1469
    %v1471 = vmul.f32 1.0, %v1470
    %v1472 = vsel %vm355, %v1465, %v1471
    %v1473 = vmul.f32 %v1464, %v1338
    %1475 = vrot.lane.b32.xlu0 %v1464, 64
    %v1476 = vpop.permute.xlu0 %1475
    %v1478 = vmul.f32 %v1464, %v1476
    %1480 = vrot.lane.b32.xlu0 %v1478, 32
    %v1481 = vpop.permute.xlu0 %1480
    %v1483 = vadd.f32 %v1473, %v1481
    %v1484 = vtanh.pop %v1483
    %1486 = vrot.lane.b32.xlu0 %v1484, 64
    %v1487 = vpop.permute.xlu0 %1486
    %v1489 = vmul.f32 %v1464, %v1487
    %v1490 = vmul.f32 %v1472, %v1355
    %1492 = vrot.lane.b32.xlu0 %v1472, 64
    %v1493 = vpop.permute.xlu0 %1492
    %v1495 = vmul.f32 %v1472, %v1493
    %1497 = vrot.lane.b32.xlu0 %v1495, 32
    %v1498 = vpop.permute.xlu0 %1497
    %v1500 = vadd.f32 %v1490, %v1498
    %v1501 = vtanh.pop %v1500
    %1503 = vrot.lane.b32.xlu0 %v1501, 64
    %v1504 = vpop.permute.xlu0 %1503
    %v1506 = vmul.f32 %v1472, %v1504
    %1508 = vrot.lane.b32.xlu0 %v1489, 32
    %v1509 = vpop.permute.xlu0 %1508
    %s1511 = scalar_lea.vmem [#allocation4], 14
    %1512 = vst.msk [vmem:[%s1511] sm:$0x3] %vm490, %v1509
    %1514 = vrot.lane.b32.xlu0 %v1506, 32
    %v1515 = vpop.permute.xlu0 %1514
    %1517 = vst.msk [vmem:[#allocation5] sm:$0x3] %vm490, %v1515
    %v1518 = vld [vmem:[#allocation4] sm:$0x3]
    %v1519 = vld [vmem:[#allocation4 + $0x2] sm:$0x3]
    %v1520 = vld [vmem:[#allocation4 + $0x4] sm:$0x3]
    %v1521 = vld [vmem:[#allocation4 + $0x6] sm:$0x3]
    %v1522 = vld [vmem:[#allocation4 + $0x8] sm:$0x3]
    %v1523 = vld [vmem:[#allocation4 + $0xa] sm:$0x3]
    %v1524 = vld [vmem:[#allocation4 + $0xc] sm:$0x3]
    %v1525 = vld [vmem:[#allocation4 + $0xe] sm:$0x3]
    %v1526 = vld [vmem:[#allocation5] sm:$0x3]
    %v1527 = vld [vmem:[#allocation5 + $0x2] sm:$0x3]
    %v1528 = vld [vmem:[#allocation5 + $0x4] sm:$0x3]
    %v1529 = vld [vmem:[#allocation5 + $0x6] sm:$0x3]
    %v1530 = vld [vmem:[#allocation5 + $0x8] sm:$0x3]
    %v1531 = vld [vmem:[#allocation5 + $0xa] sm:$0x3]
    %v1532 = vld [vmem:[#allocation5 + $0xc] sm:$0x3]
    %v1533 = vld [vmem:[#allocation5 + $0xe] sm:$0x3]
    %1542 = vrot.lane.b32.xlu0 %v1526, 32
    %v1543 = vpop.permute.xlu0 %1542
    %1544 = vrot.lane.b32.xlu0 %v1527, 32
    %v1545 = vpop.permute.xlu0 %1544
    %1546 = vrot.lane.b32.xlu0 %v1528, 32
    %v1547 = vpop.permute.xlu0 %1546
    %1548 = vrot.lane.b32.xlu0 %v1529, 32
    %v1549 = vpop.permute.xlu0 %1548
    %1550 = vrot.lane.b32.xlu0 %v1530, 32
    %v1551 = vpop.permute.xlu0 %1550
    %1552 = vrot.lane.b32.xlu0 %v1531, 32
    %v1553 = vpop.permute.xlu0 %1552
    %1554 = vrot.lane.b32.xlu0 %v1532, 32
    %v1555 = vpop.permute.xlu0 %1554
    %1556 = vrot.lane.b32.xlu0 %v1533, 32
    %v1557 = vpop.permute.xlu0 %1556
    %v1566 = vsel %vm149, %v1518, %v1543
    %v1567 = vsel %vm149, %v1519, %v1545
    %v1568 = vsel %vm149, %v1520, %v1547
    %v1569 = vsel %vm149, %v1521, %v1549
    %v1570 = vsel %vm149, %v1522, %v1551
    %v1571 = vsel %vm149, %v1523, %v1553
    %v1572 = vsel %vm149, %v1524, %v1555
    %v1573 = vsel %vm149, %v1525, %v1557
    %v1574 = vld [vmem:[#allocation12] sm:$0xff]
    %v1575 = vld [vmem:[#allocation12 + $0x8] sm:$0xff]
    %v1576 = vld [vmem:[#allocation12 + $0x10] sm:$0xff]
    %v1577 = vld [vmem:[#allocation12 + $0x18] sm:$0xff]
    %v1578 = vld [vmem:[#allocation12 + $0x20] sm:$0xff]
    %v1579 = vld [vmem:[#allocation12 + $0x28] sm:$0xff]
    %v1580 = vld [vmem:[#allocation12 + $0x30] sm:$0xff]
    %v1581 = vld [vmem:[#allocation12 + $0x38] sm:$0xff]
    %v1582 = vld [vmem:[%s5] sm:$0x1]
    %v1584 = vlaneseq
    %v1585 = vshrl.u32 %v1584, 7
    %v1586 = vsub.s32 0, %v1585
    %v1587 = vrot.slane %v1582, %v1586
    %v1597 = vcombine.low %v1566, %v1567
    %v1598 = vcombine.low %v1568, %v1569
    %v1600 = vunpack.c.l.s4 1983009808
    %v1601 = vunpack.c.0.s8 %v1600
    %v1602 = vlaneseq
    %v1603 = vshrl.u32 %v1602, 7
    %v1604 = vsub.s32 %v1601, %v1603
    %v1605 = vrot.slane %v1597, %v1604
    %v1607 = vunpack.c.l.s4 1983009808
    %v1608 = vunpack.c.0.s8 %v1607
    %v1609 = vlaneseq
    %v1610 = vshrl.u32 %v1609, 7
    %v1611 = vsub.s32 %v1608, %v1610
    %v1612 = vrot.slane %v1598, %v1611
    %v1613 = vcombine.low %v1605, %v1612
    %v1614 = vcombine.low %v1570, %v1571
    %v1615 = vcombine.low %v1572, %v1573
    %v1617 = vunpack.c.l.s4 1983009808
    %v1618 = vunpack.c.0.s8 %v1617
    %v1619 = vlaneseq
    %v1620 = vshrl.u32 %v1619, 7
    %v1621 = vsub.s32 %v1618, %v1620
    %v1622 = vrot.slane %v1614, %v1621
    %v1624 = vunpack.c.l.s4 1983009808
    %v1625 = vunpack.c.0.s8 %v1624
    %v1626 = vlaneseq
    %v1627 = vshrl.u32 %v1626, 7
    %v1628 = vsub.s32 %v1625, %v1627
    %v1629 = vrot.slane %v1615, %v1628
    %v1630 = vcombine.low %v1622, %v1629
    %v1631 = vsel %vm356, %v1613, 0
    %v1633 = vsel %vm356, %v1630, 0
    %1635 = vmatprep.subr.mxu0 0.0
    %1636 = vmatpush1.msra.mxu0 %v1574
    %1637 = vmatprep.subr.mxu0 0.0
    %1638 = vmatpush1.msra.mxu0 %v1575
    %1639 = vmatprep.subr.mxu0 0.0
    %1640 = vmatpush1.msra.mxu0 %v1576
    %1641 = vmatprep.subr.mxu0 0.0
    %1642 = vmatpush1.msra.mxu0 %v1577
    %1643 = vmatprep.subr.mxu0 0.0
    %1644 = vmatpush1.msra.mxu0 %v1578
    %1645 = vmatprep.subr.mxu0 0.0
    %1646 = vmatpush1.msra.mxu0 %v1579
    %1647 = vmatprep.subr.mxu0 0.0
    %1648 = vmatpush1.msra.mxu0 %v1580
    %1649 = vmatprep.subr.mxu0 0.0
    %1650 = vmatpush1.msra.mxu0 %v1581
    %1651 = vmatprep.subr.mxu0 0.0
    %1652 = vmatpush1.msra.mxu0 0.0
    %1653 = vmatprep.subr.mxu0 0.0
    %1654 = vmatpush1.msra.mxu0 0.0
    %1655 = vmatprep.subr.mxu0 0.0
    %1656 = vmatpush1.msra.mxu0 0.0
    %1657 = vmatprep.subr.mxu0 0.0
    %1658 = vmatpush1.msra.mxu0 0.0
    %1659 = vmatprep.subr.mxu0 0.0
    %1660 = vmatpush1.msra.mxu0 0.0
    %1661 = vmatprep.subr.mxu0 0.0
    %1662 = vmatpush1.msra.mxu0 0.0
    %1663 = vmatprep.subr.mxu0 0.0
    %1664 = vmatpush1.msra.mxu0 0.0
    %1665 = vmatprep.subr.mxu0 0.0
    %1666 = vmatpush1.msra.mxu0 0.0
    %1667 = vmatprep.subr.mxu0 0.0
    %1668 = vmatpush1.msra.mxu0 0.0
    %1669 = vmatprep.subr.mxu0 0.0
    %1670 = vmatpush1.msra.mxu0 0.0
    %1671 = vmatprep.subr.mxu0 0.0
    %1672 = vmatpush1.msra.mxu0 0.0
    %1673 = vmatprep.subr.mxu0 0.0
    %1674 = vmatpush1.msra.mxu0 0.0
    %1675 = vmatprep.subr.mxu0 0.0
    %1676 = vmatpush1.msra.mxu0 0.0
    %1677 = vmatprep.subr.mxu0 0.0
    %1678 = vmatpush1.msra.mxu0 0.0
    %1679 = vmatprep.subr.mxu0 0.0
    %1680 = vmatpush1.msra.mxu0 0.0
    %1681 = vmatprep.subr.mxu0 0.0
    %1682 = vmatpush1.msra.mxu0 0.0
    %1683 = vmatprep.subr.mxu0 0.0
    %1684 = vmatpush1.msra.mxu0 0.0
    %1685 = vmatprep.subr.mxu0 0.0
    %1686 = vmatpush1.msra.mxu0 0.0
    %1687 = vmatprep.subr.mxu0 0.0
    %1688 = vmatpush1.msra.mxu0 0.0
    %1689 = vmatprep.subr.mxu0 0.0
    %1690 = vmatpush1.msra.mxu0 0.0
    %1691 = vmatprep.subr.mxu0 0.0
    %1692 = vmatpush1.msra.mxu0 0.0
    %1693 = vmatprep.subr.mxu0 0.0
    %1694 = vmatpush1.msra.mxu0 0.0
    %1695 = vmatprep.subr.mxu0 0.0
    %1696 = vmatpush1.msra.mxu0 0.0
    %1697 = vmatprep.subr.mxu0 0.0
    %1698 = vmatpush1.msra.mxu0 0.0
    %1699 = vmatprep.mubr.f32.mxu0 0.0
    %1700 = vmatmul.mubr.f32.gmra.mrb[0].mxu0 %v1631
    %v1701 = vpop.f32.mrb[0].mxu0
    %v1702 = vadd.f32 %v1587, %v1701
    %v1703 = vpop.f32.mrb[0].mxu0
    %1704 = vmatprep.mubr.f32.mxu0 0.0
    %1705 = vmatmul.mubr.f32.gmra.mrb[0].mxu0 %v1633
    %v1706 = vpop.f32.mrb[0].mxu0
    %v1707 = vadd.f32 %v1587, %v1706
    %v1708 = vpop.f32.mrb[0].mxu0
    %1709 = vdwg.mxu0
    %v1712 = vcombine.high %v1702, %v1702
    %v1714 = vunpack.c.l.s4 1983009808
    %v1715 = vunpack.c.0.s8 %v1714
    %v1716 = vlaneseq
    %v1717 = vshrl.u32 %v1716, 7
    %v1718 = vsub.s32 %v1715, %v1717
    %v1719 = vrot.slane %v1702, %v1718
    %v1721 = vunpack.c.l.s4 1983009808
    %v1722 = vunpack.c.0.s8 %v1721
    %v1723 = vlaneseq
    %v1724 = vshrl.u32 %v1723, 7
    %v1725 = vsub.s32 %v1722, %v1724
    %v1726 = vrot.slane %v1712, %v1725
    %v1727 = vcombine.high %v1719, %v1719
    %v1728 = vcombine.high %v1726, %v1726
    %v1729 = vcombine.high %v1707, %v1707
    %v1731 = vunpack.c.l.s4 1983009808
    %v1732 = vunpack.c.0.s8 %v1731
    %v1733 = vlaneseq
    %v1734 = vshrl.u32 %v1733, 7
    %v1735 = vsub.s32 %v1732, %v1734
    %v1736 = vrot.slane %v1707, %v1735
    %v1738 = vunpack.c.l.s4 1983009808
    %v1739 = vunpack.c.0.s8 %v1738
    %v1740 = vlaneseq
    %v1741 = vshrl.u32 %v1740, 7
    %v1742 = vsub.s32 %v1739, %v1741
    %v1743 = vrot.slane %v1729, %v1742
    %v1744 = vcombine.high %v1736, %v1736
    %v1745 = vcombine.high %v1743, %v1743
    %1754 = vst [vmem:[#allocation14] sm:$0x3] %v1719
    %1755 = vst [vmem:[#allocation14 + $0x2] sm:$0x3] %v1727
    %1756 = vst [vmem:[#allocation14 + $0x4] sm:$0x3] %v1726
    %1757 = vst [vmem:[#allocation14 + $0x6] sm:$0x3] %v1728
    %1758 = vst [vmem:[#allocation14 + $0x8] sm:$0x3] %v1736
    %1759 = vst [vmem:[#allocation14 + $0xa] sm:$0x3] %v1744
    %1760 = vst [vmem:[#allocation14 + $0xc] sm:$0x3] %v1743
    %1761 = vst [vmem:[#allocation14 + $0xe] sm:$0x3] %v1745
    // Predicated region
    $region42: #{tpu_custom_call.1} parent=1 // pred_check
      _
    $region43: #{tpu_custom_call.1} parent=1 // pred_check_branch
      %1763 = sbr.rel (0) target = $region45
    $region44: #{tpu_custom_call.1} parent=1 // pred_region
      %s1765 = ssub.s32 256, 256
      %1766 = vsyncadd [#allocation8], %s1765
      %s1767 = sshll.u32 [#allocation14], 4
      %s1768 = int_to_ptr.vmem [resolvable:$true] %s1767
      %1773 = dma.vmem_to_hbm [thread:$0]  %s1768, 256, %s6, [#allocation8], 32, 32, 2
    $region45: #{tpu_custom_call.1} parent=1 // pred_fallthru
      _
    // Predicated region
    $region46: #{tpu_custom_call.1} parent=1 // pred_check
      _
    $region47: #{tpu_custom_call.1} parent=1 // pred_check_branch
      %1775 = sbr.rel (0) target = $region49
    $region48: #{tpu_custom_call.1} parent=1 // pred_region
      %1776 = dma.done [#allocation8], 256
    $region49: #{tpu_custom_call.1} parent=1 // pred_fallthru
      _
    %1777 = vsyncpa [#allocation7], 1
    %1778 = vsyncpa [#allocation10], 1
    %1779 = vsyncpa [#allocation13], 1
    %1780 = vsyncpa [#allocation8], 1

</llo_original>
